<compile_context>
chip_gen: v6e
topology: v6e:2x2x1
jax: 0.10.0
libtpu: 0.0.40
codegen_flags: <defaults>
</compile_context>

<pallas_src>
import functools
import math

import jax
import jax.numpy as jnp
from jax import lax
from jax.experimental import pallas as pl
from jax.experimental.pallas import tpu as pltpu


def _sparse_flash_kernel(tmap_ref, cnt_ref, q_ref, k_ref, v_ref, m_ref, o_ref,
                         qs_ref, row_max, row_sum, acc,
                         *, scale, num_heads, mxu_dtype):
    """One (batch, q-tile, kv-step) grid step; all heads handled in-kernel.

    Block shapes (native [b, s, n, hn] layout, no wrapper transposes):
      q_ref : (1, tq,  n, hn)
      k_ref : (1, tkv, n, hn)   kv tile chosen by the prefetched sparsity table
      v_ref : (1, tkv, n, hn)
      m_ref : (1, tq, tkv)      int8, shared across heads
      o_ref : (tq, 1, n, hn)    output written directly in [s, b, n, hn]
    Scratch:
      qs_ref  : (n, tq, hn)  pre-scaled, head-major Q (filled once per q-tile)
      row_max : (n, tq, 1)   running max  (f32)
      row_sum : (n, tq, 1)   running sum  (f32)
      acc     : (n, tq, hn)  output accumulator (f32)
    """
    ib = pl.program_id(0)
    iq = pl.program_id(1)
    ik = pl.program_id(2)
    n_q_tiles = pl.num_programs(1)
    n_kv_steps = pl.num_programs(2)

    @pl.when(ik == 0)
    def _init():
        row_max[...] = jnp.full_like(row_max, -1e30)
        row_sum[...] = jnp.zeros_like(row_sum)
        acc[...] = jnp.zeros_like(acc)
        # Hoisted out of the kv loop: scale + head-major relayout once per q-tile.
        for h in range(num_heads):
            qh = q_ref[0, :, h, :] * scale
            if mxu_dtype is not None:
                qh = qh.astype(mxu_dtype)
            qs_ref[h] = qh

    count = cnt_ref[ib * n_q_tiles + iq]

    @pl.when(ik < count)          # padded (all-zero) kv steps: skip all compute
    def _compute():
        # Head-shared mask, materialized once per kv step and reused by all
        # heads: the additive bias keeps the running max over valid entries
        # only; the 0/1 factor re-zeros masked positions after the exp so the
        # sparse softmax is exact (empty rows stay exactly zero).
        mask_f = (m_ref[0] != 0).astype(jnp.float32)          # (tq, tkv)
        bias = (mask_f - 1.0) * 1e30                          # 0 valid / -1e30 masked
        for h in range(num_heads):
            qh = qs_ref[h]                                    # (tq, hn)
            kh = k_ref[0, :, h, :]                            # (tkv, hn)
            vh = v_ref[0, :, h, :]                            # (tkv, hn)
            if mxu_dtype is not None:
                kh = kh.astype(mxu_dtype)
                vh = vh.astype(mxu_dtype)
            # Q @ K^T: contract the last (lane) dims, f32 accumulation on MXU.
            s = lax.dot_general(qh, kh, (((1,), (1,)), ((), ())),
                                preferred_element_type=jnp.float32)
            s = s + bias
            m_prev = row_max[h]                               # (tq, 1)
            m_new = jnp.maximum(m_prev, jnp.max(s, axis=-1, keepdims=True))
            alpha = jnp.exp(m_prev - m_new)
            p = jnp.exp(s - m_new) * mask_f                   # exact 0 if masked
            row_sum[h] = alpha * row_sum[h] + jnp.sum(p, axis=-1, keepdims=True)
            acc[h] = alpha * acc[h] + lax.dot_general(
                p.astype(vh.dtype), vh, (((1,), (0,)), ((), ())),
                preferred_element_type=jnp.float32)
            row_max[h] = m_new

    @pl.when(ik == n_kv_steps - 1)
    def _finalize():
        for h in range(num_heads):
            denom = row_sum[h]                                # (tq, 1)
            r = pl.reciprocal(denom, approx=True)             # EUP slot
            r = r * (2.0 - denom * r)                         # one Newton step
            inv = jnp.where(denom > 0.0, r, 0.0)              # empty rows -> 0
            o_ref[:, 0, h, :] = (acc[h] * inv).astype(o_ref.dtype)


def _vmem_capacity_bytes():
    try:
        return int(getattr(pltpu.get_tpu_info(), "vmem_capacity_bytes",
                           64 * 1024 * 1024))
    except Exception:
        return 64 * 1024 * 1024          # conservative (v7x-sized) fallback


def _divisor_tile(dim, target, align=128):
    """Largest multiple of `align` dividing `dim` that is <= target (dim if small)."""
    if dim <= target:
        return dim
    best = align
    t = align
    while t <= target:
        if dim % t == 0:
            best = t
        t += align
    return best


def _working_set_bytes(tq, tkv, n, hn, itemsize):
    q_blk = tq * n * hn * itemsize
    kv_blk = tkv * n * hn * itemsize
    m_blk = tq * tkv                                  # int8 mask tile
    o_blk = tq * n * hn * itemsize
    scratch = n * tq * (hn * (4 + itemsize) + 8)      # acc(f32) + qs + max/sum
    return 2 * (q_blk + 2 * kv_blk + m_blk + o_blk) + scratch


_TILE_CANDIDATES = ((512, 1024), (256, 1024), (256, 512),
                    (128, 512), (128, 256), (128, 128))


def _choose_tiles(s_pad, batch, n, hn, itemsize, q_tile, kv_tile):
    """Generation-aware tile / VMEM-limit selection (v5e/v6e 128 MiB, v7x 64 MiB)."""
    cap = _vmem_capacity_bytes()
    vmem_limit = min(int(cap * 0.6), 100 * 1024 * 1024)
    budget = int(cap * 0.45)             # leave headroom for Mosaic bookkeeping

    if q_tile is not None and kv_tile is not None:
        return q_tile, kv_tile, vmem_limit

    tq = tkv = s_pad
    for tgt_q, tgt_kv in _TILE_CANDIDATES:
        tq = q_tile if q_tile is not None else _divisor_tile(s_pad, tgt_q)
        tkv = kv_tile if kv_tile is not None else _divisor_tile(s_pad, tgt_kv)
        if _working_set_bytes(tq, tkv, n, hn, itemsize) <= budget:
            break
    # TODO(synk): for very large head counts a head-tile grid axis is needed to
    # keep the per-step working set inside v7x's 64 MiB VMEM.
    # v7x megacore: keep >= 2 parallel work units so both TensorCores are fed.
    if q_tile is None and batch * (s_pad // tq) < 2 and s_pad % 256 == 0:
        tq = s_pad // 2
    return tq, tkv, vmem_limit


def sparse_core_attention(query, key, value, mask, *, seq_length, hidden_size,
                          num_attention_heads, q_tile=None, kv_tile=None,
                          max_kv_steps=None, mxu_dtype=None, kv_buffers=None):
    """query/key/value: [b, s, n, hn]; mask: [b, 1, s, s].  Returns [s, b, n*hn].

    max_kv_steps: static bound on nonzero kv tiles per (batch, q-tile). If None
      it is read off the (concrete) mask; under jit it falls back to the dense
      kv-tile count (per-step compute skipping still applies).
    mxu_dtype: optional dtype (e.g. jnp.bfloat16) for the MXU feed (f32 accum).
    kv_buffers: optional K/V pipeline depth (pl.Buffered).
    """
    b, s, n, hn = query.shape
    assert s == seq_length
    assert n == num_attention_heads and n * hn == hidden_size
    scale = 1.0 / math.sqrt(hidden_size // num_attention_heads)

    mask_b = jnp.squeeze(mask, axis=1) != 0                    # (b, s, s) bool

    # Pad seq to a multiple of 128 so tiles stay (8,128)-friendly instead of
    # silently reverting to O(s^2) blocks; padded rows/cols are fully masked.
    s_pad = s if s < 128 else ((s + 127) // 128) * 128
    if s_pad != s:
        pad = s_pad - s
        query = jnp.pad(query, ((0, 0), (0, pad), (0, 0), (0, 0)))
        key = jnp.pad(key, ((0, 0), (0, pad), (0, 0), (0, 0)))
        value = jnp.pad(value, ((0, 0), (0, pad), (0, 0), (0, 0)))
        mask_b = jnp.pad(mask_b, ((0, 0), (0, pad), (0, pad)))

    tq, tkv, vmem_limit = _choose_tiles(s_pad, b, n, hn, query.dtype.itemsize,
                                        q_tile, kv_tile)
    assert s_pad % tq == 0 and s_pad % tkv == 0, (s_pad, tq, tkv)
    n_q, n_kv = s_pad // tq, s_pad // tkv

    # ---- block-sparsity metadata (kv-tile occupancy of the head-shared mask) ----
    occ = jnp.any(mask_b.reshape(b, n_q, tq, n_kv, tkv), axis=(2, 4))  # (b,nq,nkv)
    counts = jnp.sum(occ, axis=-1).astype(jnp.int32)                   # (b, nq)
    if max_kv_steps is None:
        try:
            max_kv_steps = max(int(jnp.max(counts)), 1)
        except (jax.errors.ConcretizationTypeError, TypeError):
            max_kv_steps = n_kv     # traced mask: keep dense grid, still guarded
    max_kv_steps = max(1, min(int(max_kv_steps), n_kv))
    counts = jnp.minimum(counts, max_kv_steps)
    idx = jnp.arange(n_kv, dtype=jnp.int32)
    # Nonzero kv-tile indices first (ascending); padding steps repeat the last
    # valid tile so their DMA is a no-op (same block index as previous step).
    order = jnp.argsort(jnp.where(occ, idx, n_kv + idx), axis=-1).astype(jnp.int32)
    last = jnp.take_along_axis(order, jnp.maximum(counts - 1, 0)[..., None], axis=-1)
    tile_map = jnp.where(idx[None, None, :max_kv_steps] < counts[..., None],
                         order[:, :, :max_kv_steps], last)
    tmap_flat = tile_map.reshape(-1)       # 1-D int32 => compact in SMEM
    cnt_flat = counts.reshape(-1)

    mask_i8 = mask_b.astype(jnp.int8)      # 4x less HBM/VMEM than an f32 mask

    def _q_index(ib, iq, ik, tmap, cnt):
        return (ib, iq, 0, 0)

    def _kv_index(ib, iq, ik, tmap, cnt):
        return (ib, tmap[(ib * n_q + iq) * max_kv_steps + ik], 0, 0)

    def _m_index(ib, iq, ik, tmap, cnt):
        return (ib, iq, tmap[(ib * n_q + iq) * max_kv_steps + ik])

    def _o_index(ib, iq, ik, tmap, cnt):
        return (iq, ib, 0, 0)

    kv_kwargs = {} if kv_buffers is None else {"pipeline_mode": pl.Buffered(kv_buffers)}
    q_spec = pl.BlockSpec((1, tq, n, hn), _q_index)
    k_spec = pl.BlockSpec((1, tkv, n, hn), _kv_index, **kv_kwargs)
    v_spec = pl.BlockSpec((1, tkv, n, hn), _kv_index, **kv_kwargs)
    m_spec = pl.BlockSpec((1, tq, tkv), _m_index)
    o_spec = pl.BlockSpec((tq, 1, n, hn), _o_index)

    qs_dtype = mxu_dtype if mxu_dtype is not None else query.dtype

    out = pl.pallas_call(
        functools.partial(_sparse_flash_kernel, scale=scale, num_heads=n,
                          mxu_dtype=mxu_dtype),
        out_shape=jax.ShapeDtypeStruct((s_pad, b, n, hn), query.dtype),
        grid_spec=pltpu.PrefetchScalarGridSpec(
            num_scalar_prefetch=2,
            grid=(b, n_q, max_kv_steps),
            in_specs=[q_spec, k_spec, v_spec, m_spec],
            out_specs=o_spec,
            scratch_shapes=[
                pltpu.VMEM((n, tq, hn), qs_dtype),     # pre-scaled head-major Q
                pltpu.VMEM((n, tq, 1), jnp.float32),   # running row max
                pltpu.VMEM((n, tq, 1), jnp.float32),   # running row sum
                pltpu.VMEM((n, tq, hn), jnp.float32),  # output accumulator
            ],
        ),
        compiler_params=pltpu.CompilerParams(
            dimension_semantics=("parallel", "parallel", "arbitrary"),
            vmem_limit_bytes=vmem_limit,
        ),
    )(tmap_flat, cnt_flat, query, key, value, mask_i8)

    if s_pad != s:
        out = out[:s]
    # [s, b, n, hn] -> [s, b, n*hn] is a free (contiguous) reshape.
    return out.reshape(s, b, n * hn)


def _reference(query, key, value, mask, *, hidden_size, num_attention_heads):
    b, s, n, hn = query.shape
    scale = 1.0 / math.sqrt(hidden_size // num_attention_heads)
    q = jnp.transpose(query, (0, 2, 1, 3)).astype(jnp.float32)
    k = jnp.transpose(key, (0, 2, 1, 3)).astype(jnp.float32)
    v = jnp.transpose(value, (0, 2, 1, 3)).astype(jnp.float32)
    m = (jnp.squeeze(mask, axis=1) != 0)[:, None, :, :]  # [b,1,s,s]
    scores = jnp.einsum("bnqd,bnkd->bnqk", q, k) * scale
    scores = jnp.where(m, scores, -1e30)
    p = jnp.where(m, jnp.exp(scores - scores.max(-1, keepdims=True)), 0.0)
    denom = p.sum(-1, keepdims=True)
    w = p * jnp.where(denom > 0, 1.0 / denom, 0.0)
    out = jnp.einsum("bnqk,bnkd->bnqd", w, v)
    return jnp.transpose(out, (2, 0, 1, 3)).reshape(s, b, n * hn)


if __name__ == "__main__":
    # Small shapes: batch=2, seq=8, heads=2, head_dim=16 -> hidden=32.
    B, S, N, HN = 2, 8, 2, 16
    HIDDEN = N * HN

    key0 = jax.random.PRNGKey(0)
    kq, kk, kv_, km = jax.random.split(key0, 4)
    query = jax.random.normal(kq, (B, S, N, HN), dtype=jnp.float32)
    key_t = jax.random.normal(kk, (B, S, N, HN), dtype=jnp.float32)
    value = jax.random.normal(kv_, (B, S, N, HN), dtype=jnp.float32)

    # Binary sparsity mask, diagonal forced on so every row has >=1 nonzero.
    mask = jax.random.bernoulli(km, 0.5, (B, 1, S, S)).astype(jnp.float32)
    eye = jnp.eye(S, dtype=jnp.float32)[None, None]
    mask = jnp.maximum(mask, eye)

    out = sparse_core_attention(
        query, key_t, value, mask,
        seq_length=S, hidden_size=HIDDEN, num_attention_heads=N,
    )
    out = jax.block_until_ready(out)

    ref = _reference(query, key_t, value, mask,
                     hidden_size=HIDDEN, num_attention_heads=N)
    assert out.shape == (S, B, HIDDEN), out.shape
    assert jnp.allclose(out, ref, atol=1e-3, rtol=1e-3), (
        float(jnp.max(jnp.abs(out - ref))))

    print("KERNEL_OK")
</pallas_src>

<mosaic_0001>
module attributes {stable_mosaic.version = 11 : i64} {
  func.func @_sparse_flash_kernel(%arg0: i32, %arg1: i32, %arg2: i32, %arg3: memref<2xi32, #tpu.memory_space<smem>>, %arg4: memref<2xi32, #tpu.memory_space<smem>>, %arg5: memref<1x8x2x16xf32, #tpu.memory_space<vmem>>, %arg6: memref<1x8x2x16xf32, #tpu.memory_space<vmem>>, %arg7: memref<1x8x2x16xf32, #tpu.memory_space<vmem>>, %arg8: memref<1x8x8xi8, #tpu.memory_space<vmem>>, %arg9: memref<8x1x2x16xf32, #tpu.memory_space<vmem>>, %arg10: memref<2x8x16xf32, #tpu.memory_space<vmem>>, %arg11: memref<2x8x1xf32, #tpu.memory_space<vmem>>, %arg12: memref<2x8x1xf32, #tpu.memory_space<vmem>>, %arg13: memref<2x8x16xf32, #tpu.memory_space<vmem>>) attributes {dimension_semantics = [#tpu.dimension_semantics<parallel>, #tpu.dimension_semantics<parallel>, #tpu.dimension_semantics<arbitrary>], iteration_bounds = array<i64: 2, 1, 1>, scalar_prefetch = 2 : i64, scratch_operands = 4 : i64, tpu.core_type = #tpu.core_type<tc>, window_params = [{transform_indices = @transform_0, window_bounds = array<i64: 1, 8, 2, 16>}, {transform_indices = @transform_1, window_bounds = array<i64: 1, 8, 2, 16>}, {transform_indices = @transform_2, window_bounds = array<i64: 1, 8, 2, 16>}, {transform_indices = @transform_3, window_bounds = array<i64: 1, 8, 8>}, {transform_indices = @transform_4, window_bounds = array<i64: 8, 1, 2, 16>}]} {
    %c0_i32 = arith.constant 0 : i32
    %0 = arith.cmpi eq, %arg2, %c0_i32 : i32
    %1 = arith.extui %0 : i1 to i32
    %c0_i32_0 = arith.constant 0 : i32
    %2 = arith.cmpi ne, %1, %c0_i32_0 : i32
    scf.if %2 {
      %cst = arith.constant -1.000000e+30 : f32
      %13 = vector.broadcast %cst : f32 to vector<2x8x1xf32>
      %c0 = arith.constant 0 : index
      %c0_4 = arith.constant 0 : index
      %c0_5 = arith.constant 0 : index
      %14 = vector.load %arg11[%c0, %c0_4, %c0_5] : memref<2x8x1xf32, #tpu.memory_space<vmem>>, vector<2x8x1xf32>
      tpu.vector_store %arg11[%c0, %c0_4, %c0_5], %13 {strides = array<i32>} : memref<2x8x1xf32, #tpu.memory_space<vmem>>, vector<2x8x1xf32>,
      %cst_6 = arith.constant 0.000000e+00 : f32
      %15 = vector.broadcast %cst_6 : f32 to vector<2x8x1xf32>
      %c0_7 = arith.constant 0 : index
      %c0_8 = arith.constant 0 : index
      %c0_9 = arith.constant 0 : index
      %16 = vector.load %arg12[%c0_7, %c0_8, %c0_9] : memref<2x8x1xf32, #tpu.memory_space<vmem>>, vector<2x8x1xf32>
      tpu.vector_store %arg12[%c0_7, %c0_8, %c0_9], %15 {strides = array<i32>} : memref<2x8x1xf32, #tpu.memory_space<vmem>>, vector<2x8x1xf32>,
      %cst_10 = arith.constant 0.000000e+00 : f32
      %17 = vector.broadcast %cst_10 : f32 to vector<2x8x16xf32>
      %c0_11 = arith.constant 0 : index
      %c0_12 = arith.constant 0 : index
      %c0_13 = arith.constant 0 : index
      %18 = vector.load %arg13[%c0_11, %c0_12, %c0_13] : memref<2x8x16xf32, #tpu.memory_space<vmem>>, vector<2x8x16xf32>
      tpu.vector_store %arg13[%c0_11, %c0_12, %c0_13], %17 {strides = array<i32>} : memref<2x8x16xf32, #tpu.memory_space<vmem>>, vector<2x8x16xf32>,
      %c0_14 = arith.constant 0 : index
      %c0_15 = arith.constant 0 : index
      %c0_16 = arith.constant 0 : index
      %c0_17 = arith.constant 0 : index
      %19 = vector.load %arg5[%c0_14, %c0_15, %c0_16, %c0_17] : memref<1x8x2x16xf32, #tpu.memory_space<vmem>>, vector<1x8x1x16xf32>
      %20 = vector.shape_cast %19 : vector<1x8x1x16xf32> to vector<8x16xf32>
      %cst_18 = arith.constant 2.500000e-01 : f32
      %21 = vector.broadcast %cst_18 : f32 to vector<8x16xf32>
      %22 = arith.mulf %20, %21 : vector<8x16xf32>
      %c0_19 = arith.constant 0 : index
      %c0_20 = arith.constant 0 : index
      %c0_21 = arith.constant 0 : index
      %23 = vector.load %arg10[%c0_19, %c0_20, %c0_21] : memref<2x8x16xf32, #tpu.memory_space<vmem>>, vector<1x8x16xf32>
      %24 = vector.shape_cast %23 : vector<1x8x16xf32> to vector<8x16xf32>
      %25 = vector.shape_cast %22 : vector<8x16xf32> to vector<1x8x16xf32>
      tpu.vector_store %arg10[%c0_19, %c0_20, %c0_21], %25 {strides = array<i32>} : memref<2x8x16xf32, #tpu.memory_space<vmem>>, vector<1x8x16xf32>,
      %c0_22 = arith.constant 0 : index
      %c0_23 = arith.constant 0 : index
      %c1 = arith.constant 1 : index
      %c0_24 = arith.constant 0 : index
      %26 = vector.load %arg5[%c0_22, %c0_23, %c1, %c0_24] : memref<1x8x2x16xf32, #tpu.memory_space<vmem>>, vector<1x8x1x16xf32>
      %27 = vector.shape_cast %26 : vector<1x8x1x16xf32> to vector<8x16xf32>
      %cst_25 = arith.constant 2.500000e-01 : f32
      %28 = vector.broadcast %cst_25 : f32 to vector<8x16xf32>
      %29 = arith.mulf %27, %28 : vector<8x16xf32>
      %c1_26 = arith.constant 1 : index
      %c0_27 = arith.constant 0 : index
      %c0_28 = arith.constant 0 : index
      %30 = vector.load %arg10[%c1_26, %c0_27, %c0_28] : memref<2x8x16xf32, #tpu.memory_space<vmem>>, vector<1x8x16xf32>
      %31 = vector.shape_cast %30 : vector<1x8x16xf32> to vector<8x16xf32>
      %32 = vector.shape_cast %29 : vector<8x16xf32> to vector<1x8x16xf32>
      tpu.vector_store %arg10[%c1_26, %c0_27, %c0_28], %32 {strides = array<i32>} : memref<2x8x16xf32, #tpu.memory_space<vmem>>, vector<1x8x16xf32>,
    } else {
    }
    %c1_i32 = arith.constant 1 : i32
    %3 = arith.muli %arg0, %c1_i32 : i32
    %4 = arith.addi %3, %arg1 : i32
    %5 = arith.index_cast %4 : i32 to index
    %6 = memref.load %arg4[%5] : memref<2xi32, #tpu.memory_space<smem>>
    %7 = arith.cmpi slt, %arg2, %6 : i32
    %8 = arith.extui %7 : i1 to i32
    %c0_i32_1 = arith.constant 0 : i32
    %9 = arith.cmpi ne, %8, %c0_i32_1 : i32
    scf.if %9 {
      %c0 = arith.constant 0 : index
      %c0_4 = arith.constant 0 : index
      %c0_5 = arith.constant 0 : index
      %13 = vector.load %arg8[%c0, %c0_4, %c0_5] : memref<1x8x8xi8, #tpu.memory_space<vmem>>, vector<1x8x8xi8>
      %14 = vector.shape_cast %13 : vector<1x8x8xi8> to vector<8x8xi8>
      %c0_i8 = arith.constant 0 : i8
      %15 = vector.broadcast %c0_i8 : i8 to vector<8x8xi8>
      %16 = arith.cmpi ne, %14, %15 : vector<8x8xi8>
      %17 = arith.extui %16 : vector<8x8xi1> to vector<8x8xi32>
      %18 = arith.sitofp %17 : vector<8x8xi32> to vector<8x8xf32>
      %cst = arith.constant 1.000000e+00 : f32
      %19 = vector.broadcast %cst : f32 to vector<8x8xf32>
      %20 = arith.subf %18, %19 : vector<8x8xf32>
      %cst_6 = arith.constant 1.000000e+30 : f32
      %21 = vector.broadcast %cst_6 : f32 to vector<8x8xf32>
      %22 = arith.mulf %20, %21 : vector<8x8xf32>
      %c0_7 = arith.constant 0 : index
      %c0_8 = arith.constant 0 : index
      %c0_9 = arith.constant 0 : index
      %23 = vector.load %arg10[%c0_7, %c0_8, %c0_9] : memref<2x8x16xf32, #tpu.memory_space<vmem>>, vector<1x8x16xf32>
      %24 = vector.shape_cast %23 : vector<1x8x16xf32> to vector<8x16xf32>
      %c0_10 = arith.constant 0 : index
      %c0_11 = arith.constant 0 : index
      %c0_12 = arith.constant 0 : index
      %c0_13 = arith.constant 0 : index
      %25 = vector.load %arg6[%c0_10, %c0_11, %c0_12, %c0_13] : memref<1x8x2x16xf32, #tpu.memory_space<vmem>>, vector<1x8x1x16xf32>
      %26 = vector.shape_cast %25 : vector<1x8x1x16xf32> to vector<8x16xf32>
      %c0_14 = arith.constant 0 : index
      %c0_15 = arith.constant 0 : index
      %c0_16 = arith.constant 0 : index
      %c0_17 = arith.constant 0 : index
      %27 = vector.load %arg7[%c0_14, %c0_15, %c0_16, %c0_17] : memref<1x8x2x16xf32, #tpu.memory_space<vmem>>, vector<1x8x1x16xf32>
      %28 = vector.shape_cast %27 : vector<1x8x1x16xf32> to vector<8x16xf32>
      %cst_18 = arith.constant dense<0.000000e+00> : vector<8x8xf32>
      %29 = tpu.matmul %24, %26, %cst_18 {dimension_numbers = #tpu.dot_dimension_numbers<[1], [1], [0], [0], [0, 0, 1, 0], [], []>} : vector<8x16xf32>, vector<8x16xf32>, vector<8x8xf32> -> vector<8x8xf32>
      %30 = arith.addf %29, %22 : vector<8x8xf32>
      %c0_19 = arith.constant 0 : index
      %c0_20 = arith.constant 0 : index
      %c0_21 = arith.constant 0 : index
      %31 = vector.load %arg11[%c0_19, %c0_20, %c0_21] : memref<2x8x1xf32, #tpu.memory_space<vmem>>, vector<1x8x1xf32>
      %32 = vector.shape_cast %31 : vector<1x8x1xf32> to vector<8x1xf32>
      %cst_22 = arith.constant dense<0xFF800000> : vector<8xf32>
      %33 = vector.multi_reduction <maximumf>, %30, %cst_22 [1] : vector<8x8xf32> to vector<8xf32>
      %34 = vector.shape_cast %33 : vector<8xf32> to vector<8x1xf32>
      %35 = arith.maximumf %32, %34 : vector<8x1xf32>
      %36 = arith.subf %32, %35 : vector<8x1xf32>
      %37 = math.exp %36 : vector<8x1xf32>
      %38 = vector.broadcast %35 : vector<8x1xf32> to vector<8x8xf32>
      %39 = arith.subf %30, %38 : vector<8x8xf32>
      %40 = math.exp %39 : vector<8x8xf32>
      %41 = arith.mulf %40, %18 : vector<8x8xf32>
      %c0_23 = arith.constant 0 : index
      %c0_24 = arith.constant 0 : index
      %c0_25 = arith.constant 0 : index
      %42 = vector.load %arg12[%c0_23, %c0_24, %c0_25] : memref<2x8x1xf32, #tpu.memory_space<vmem>>, vector<1x8x1xf32>
      %43 = vector.shape_cast %42 : vector<1x8x1xf32> to vector<8x1xf32>
      %44 = arith.mulf %37, %43 : vector<8x1xf32>
      %cst_26 = arith.constant dense<0.000000e+00> : vector<8xf32>
      %45 = vector.multi_reduction <add>, %41, %cst_26 [1] : vector<8x8xf32> to vector<8xf32>
      %46 = vector.shape_cast %45 : vector<8xf32> to vector<8x1xf32>
      %47 = arith.addf %44, %46 : vector<8x1xf32>
      %c0_27 = arith.constant 0 : index
      %c0_28 = arith.constant 0 : index
      %c0_29 = arith.constant 0 : index
      %48 = vector.load %arg12[%c0_27, %c0_28, %c0_29] : memref<2x8x1xf32, #tpu.memory_space<vmem>>, vector<1x8x1xf32>
      %49 = vector.shape_cast %48 : vector<1x8x1xf32> to vector<8x1xf32>
      %50 = vector.shape_cast %47 : vector<8x1xf32> to vector<1x8x1xf32>
      tpu.vector_store %arg12[%c0_27, %c0_28, %c0_29], %50 {strides = array<i32>} : memref<2x8x1xf32, #tpu.memory_space<vmem>>, vector<1x8x1xf32>,
      %c0_30 = arith.constant 0 : index
      %c0_31 = arith.constant 0 : index
      %c0_32 = arith.constant 0 : index
      %51 = vector.load %arg13[%c0_30, %c0_31, %c0_32] : memref<2x8x16xf32, #tpu.memory_space<vmem>>, vector<1x8x16xf32>
      %52 = vector.shape_cast %51 : vector<1x8x16xf32> to vector<8x16xf32>
      %53 = vector.broadcast %37 : vector<8x1xf32> to vector<8x16xf32>
      %54 = arith.mulf %53, %52 : vector<8x16xf32>
      %cst_33 = arith.constant dense<0.000000e+00> : vector<8x16xf32>
      %55 = tpu.matmul %41, %28, %cst_33 {dimension_numbers = #tpu.dot_dimension_numbers<[1], [0], [0], [1], [0, 0, 1, 1], [], []>} : vector<8x8xf32>, vector<8x16xf32>, vector<8x16xf32> -> vector<8x16xf32>
      %56 = arith.addf %54, %55 : vector<8x16xf32>
      %c0_34 = arith.constant 0 : index
      %c0_35 = arith.constant 0 : index
      %c0_36 = arith.constant 0 : index
      %57 = vector.load %arg13[%c0_34, %c0_35, %c0_36] : memref<2x8x16xf32, #tpu.memory_space<vmem>>, vector<1x8x16xf32>
      %58 = vector.shape_cast %57 : vector<1x8x16xf32> to vector<8x16xf32>
      %59 = vector.shape_cast %56 : vector<8x16xf32> to vector<1x8x16xf32>
      tpu.vector_store %arg13[%c0_34, %c0_35, %c0_36], %59 {strides = array<i32>} : memref<2x8x16xf32, #tpu.memory_space<vmem>>, vector<1x8x16xf32>,
      %c0_37 = arith.constant 0 : index
      %c0_38 = arith.constant 0 : index
      %c0_39 = arith.constant 0 : index
      %60 = vector.load %arg11[%c0_37, %c0_38, %c0_39] : memref<2x8x1xf32, #tpu.memory_space<vmem>>, vector<1x8x1xf32>
      %61 = vector.shape_cast %60 : vector<1x8x1xf32> to vector<8x1xf32>
      %62 = vector.shape_cast %35 : vector<8x1xf32> to vector<1x8x1xf32>
      tpu.vector_store %arg11[%c0_37, %c0_38, %c0_39], %62 {strides = array<i32>} : memref<2x8x1xf32, #tpu.memory_space<vmem>>, vector<1x8x1xf32>,
      %c1 = arith.constant 1 : index
      %c0_40 = arith.constant 0 : index
      %c0_41 = arith.constant 0 : index
      %63 = vector.load %arg10[%c1, %c0_40, %c0_41] : memref<2x8x16xf32, #tpu.memory_space<vmem>>, vector<1x8x16xf32>
      %64 = vector.shape_cast %63 : vector<1x8x16xf32> to vector<8x16xf32>
      %c0_42 = arith.constant 0 : index
      %c0_43 = arith.constant 0 : index
      %c1_44 = arith.constant 1 : index
      %c0_45 = arith.constant 0 : index
      %65 = vector.load %arg6[%c0_42, %c0_43, %c1_44, %c0_45] : memref<1x8x2x16xf32, #tpu.memory_space<vmem>>, vector<1x8x1x16xf32>
      %66 = vector.shape_cast %65 : vector<1x8x1x16xf32> to vector<8x16xf32>
      %c0_46 = arith.constant 0 : index
      %c0_47 = arith.constant 0 : index
      %c1_48 = arith.constant 1 : index
      %c0_49 = arith.constant 0 : index
      %67 = vector.load %arg7[%c0_46, %c0_47, %c1_48, %c0_49] : memref<1x8x2x16xf32, #tpu.memory_space<vmem>>, vector<1x8x1x16xf32>
      %68 = vector.shape_cast %67 : vector<1x8x1x16xf32> to vector<8x16xf32>
      %cst_50 = arith.constant dense<0.000000e+00> : vector<8x8xf32>
      %69 = tpu.matmul %64, %66, %cst_50 {dimension_numbers = #tpu.dot_dimension_numbers<[1], [1], [0], [0], [0, 0, 1, 0], [], []>} : vector<8x16xf32>, vector<8x16xf32>, vector<8x8xf32> -> vector<8x8xf32>
      %70 = arith.addf %69, %22 : vector<8x8xf32>
      %c1_51 = arith.constant 1 : index
      %c0_52 = arith.constant 0 : index
      %c0_53 = arith.constant 0 : index
      %71 = vector.load %arg11[%c1_51, %c0_52, %c0_53] : memref<2x8x1xf32, #tpu.memory_space<vmem>>, vector<1x8x1xf32>
      %72 = vector.shape_cast %71 : vector<1x8x1xf32> to vector<8x1xf32>
      %cst_54 = arith.constant dense<0xFF800000> : vector<8xf32>
      %73 = vector.multi_reduction <maximumf>, %70, %cst_54 [1] : vector<8x8xf32> to vector<8xf32>
      %74 = vector.shape_cast %73 : vector<8xf32> to vector<8x1xf32>
      %75 = arith.maximumf %72, %74 : vector<8x1xf32>
      %76 = arith.subf %72, %75 : vector<8x1xf32>
      %77 = math.exp %76 : vector<8x1xf32>
      %78 = vector.broadcast %75 : vector<8x1xf32> to vector<8x8xf32>
      %79 = arith.subf %70, %78 : vector<8x8xf32>
      %80 = math.exp %79 : vector<8x8xf32>
      %81 = arith.mulf %80, %18 : vector<8x8xf32>
      %c1_55 = arith.constant 1 : index
      %c0_56 = arith.constant 0 : index
      %c0_57 = arith.constant 0 : index
      %82 = vector.load %arg12[%c1_55, %c0_56, %c0_57] : memref<2x8x1xf32, #tpu.memory_space<vmem>>, vector<1x8x1xf32>
      %83 = vector.shape_cast %82 : vector<1x8x1xf32> to vector<8x1xf32>
      %84 = arith.mulf %77, %83 : vector<8x1xf32>
      %cst_58 = arith.constant dense<0.000000e+00> : vector<8xf32>
      %85 = vector.multi_reduction <add>, %81, %cst_58 [1] : vector<8x8xf32> to vector<8xf32>
      %86 = vector.shape_cast %85 : vector<8xf32> to vector<8x1xf32>
      %87 = arith.addf %84, %86 : vector<8x1xf32>
      %c1_59 = arith.constant 1 : index
      %c0_60 = arith.constant 0 : index
      %c0_61 = arith.constant 0 : index
      %88 = vector.load %arg12[%c1_59, %c0_60, %c0_61] : memref<2x8x1xf32, #tpu.memory_space<vmem>>, vector<1x8x1xf32>
      %89 = vector.shape_cast %88 : vector<1x8x1xf32> to vector<8x1xf32>
      %90 = vector.shape_cast %87 : vector<8x1xf32> to vector<1x8x1xf32>
      tpu.vector_store %arg12[%c1_59, %c0_60, %c0_61], %90 {strides = array<i32>} : memref<2x8x1xf32, #tpu.memory_space<vmem>>, vector<1x8x1xf32>,
      %c1_62 = arith.constant 1 : index
      %c0_63 = arith.constant 0 : index
      %c0_64 = arith.constant 0 : index
      %91 = vector.load %arg13[%c1_62, %c0_63, %c0_64] : memref<2x8x16xf32, #tpu.memory_space<vmem>>, vector<1x8x16xf32>
      %92 = vector.shape_cast %91 : vector<1x8x16xf32> to vector<8x16xf32>
      %93 = vector.broadcast %77 : vector<8x1xf32> to vector<8x16xf32>
      %94 = arith.mulf %93, %92 : vector<8x16xf32>
      %cst_65 = arith.constant dense<0.000000e+00> : vector<8x16xf32>
      %95 = tpu.matmul %81, %68, %cst_65 {dimension_numbers = #tpu.dot_dimension_numbers<[1], [0], [0], [1], [0, 0, 1, 1], [], []>} : vector<8x8xf32>, vector<8x16xf32>, vector<8x16xf32> -> vector<8x16xf32>
      %96 = arith.addf %94, %95 : vector<8x16xf32>
      %c1_66 = arith.constant 1 : index
      %c0_67 = arith.constant 0 : index
      %c0_68 = arith.constant 0 : index
      %97 = vector.load %arg13[%c1_66, %c0_67, %c0_68] : memref<2x8x16xf32, #tpu.memory_space<vmem>>, vector<1x8x16xf32>
      %98 = vector.shape_cast %97 : vector<1x8x16xf32> to vector<8x16xf32>
      %99 = vector.shape_cast %96 : vector<8x16xf32> to vector<1x8x16xf32>
      tpu.vector_store %arg13[%c1_66, %c0_67, %c0_68], %99 {strides = array<i32>} : memref<2x8x16xf32, #tpu.memory_space<vmem>>, vector<1x8x16xf32>,
      %c1_69 = arith.constant 1 : index
      %c0_70 = arith.constant 0 : index
      %c0_71 = arith.constant 0 : index
      %100 = vector.load %arg11[%c1_69, %c0_70, %c0_71] : memref<2x8x1xf32, #tpu.memory_space<vmem>>, vector<1x8x1xf32>
      %101 = vector.shape_cast %100 : vector<1x8x1xf32> to vector<8x1xf32>
      %102 = vector.shape_cast %75 : vector<8x1xf32> to vector<1x8x1xf32>
      tpu.vector_store %arg11[%c1_69, %c0_70, %c0_71], %102 {strides = array<i32>} : memref<2x8x1xf32, #tpu.memory_space<vmem>>, vector<1x8x1xf32>,
    } else {
    }
    %c0_i32_2 = arith.constant 0 : i32
    %10 = arith.cmpi eq, %arg2, %c0_i32_2 : i32
    %11 = arith.extui %10 : i1 to i32
    %c0_i32_3 = arith.constant 0 : i32
    %12 = arith.cmpi ne, %11, %c0_i32_3 : i32
    scf.if %12 {
      %c0 = arith.constant 0 : index
      %c0_4 = arith.constant 0 : index
      %c0_5 = arith.constant 0 : index
      %13 = vector.load %arg12[%c0, %c0_4, %c0_5] : memref<2x8x1xf32, #tpu.memory_space<vmem>>, vector<1x8x1xf32>
      %14 = vector.shape_cast %13 : vector<1x8x1xf32> to vector<8x1xf32>
      %15 = tpu.reciprocal %14 {approx = true} : vector<8x1xf32> -> vector<8x1xf32>
      %16 = arith.mulf %14, %15 : vector<8x1xf32>
      %cst = arith.constant 2.000000e+00 : f32
      %17 = vector.broadcast %cst : f32 to vector<8x1xf32>
      %18 = arith.subf %17, %16 : vector<8x1xf32>
      %19 = arith.mulf %15, %18 : vector<8x1xf32>
      %cst_6 = arith.constant 0.000000e+00 : f32
      %20 = vector.broadcast %cst_6 : f32 to vector<8x1xf32>
      %21 = arith.cmpf ogt, %14, %20 : vector<8x1xf32>
      %cst_7 = arith.constant 0.000000e+00 : f32
      %22 = vector.broadcast %cst_7 : f32 to vector<8x1xf32>
      %23 = arith.select %21, %19, %22 : vector<8x1xi1>, vector<8x1xf32>
      %c0_8 = arith.constant 0 : index
      %c0_9 = arith.constant 0 : index
      %c0_10 = arith.constant 0 : index
      %24 = vector.load %arg13[%c0_8, %c0_9, %c0_10] : memref<2x8x16xf32, #tpu.memory_space<vmem>>, vector<1x8x16xf32>
      %25 = vector.shape_cast %24 : vector<1x8x16xf32> to vector<8x16xf32>
      %26 = vector.broadcast %23 : vector<8x1xf32> to vector<8x16xf32>
      %27 = arith.mulf %25, %26 : vector<8x16xf32>
      %c0_11 = arith.constant 0 : index
      %c0_12 = arith.constant 0 : index
      %c0_13 = arith.constant 0 : index
      %c0_14 = arith.constant 0 : index
      %28 = vector.load %arg9[%c0_11, %c0_12, %c0_13, %c0_14] : memref<8x1x2x16xf32, #tpu.memory_space<vmem>>, vector<8x1x1x16xf32>
      %29 = vector.shape_cast %28 : vector<8x1x1x16xf32> to vector<8x16xf32>
      %30 = vector.shape_cast %27 : vector<8x16xf32> to vector<8x1x1x16xf32>
      tpu.vector_store %arg9[%c0_11, %c0_12, %c0_13, %c0_14], %30 {strides = array<i32>} : memref<8x1x2x16xf32, #tpu.memory_space<vmem>>, vector<8x1x1x16xf32>,
      %c1 = arith.constant 1 : index
      %c0_15 = arith.constant 0 : index
      %c0_16 = arith.constant 0 : index
      %31 = vector.load %arg12[%c1, %c0_15, %c0_16] : memref<2x8x1xf32, #tpu.memory_space<vmem>>, vector<1x8x1xf32>
      %32 = vector.shape_cast %31 : vector<1x8x1xf32> to vector<8x1xf32>
      %33 = tpu.reciprocal %32 {approx = true} : vector<8x1xf32> -> vector<8x1xf32>
      %34 = arith.mulf %32, %33 : vector<8x1xf32>
      %cst_17 = arith.constant 2.000000e+00 : f32
      %35 = vector.broadcast %cst_17 : f32 to vector<8x1xf32>
      %36 = arith.subf %35, %34 : vector<8x1xf32>
      %37 = arith.mulf %33, %36 : vector<8x1xf32>
      %cst_18 = arith.constant 0.000000e+00 : f32
      %38 = vector.broadcast %cst_18 : f32 to vector<8x1xf32>
      %39 = arith.cmpf ogt, %32, %38 : vector<8x1xf32>
      %cst_19 = arith.constant 0.000000e+00 : f32
      %40 = vector.broadcast %cst_19 : f32 to vector<8x1xf32>
      %41 = arith.select %39, %37, %40 : vector<8x1xi1>, vector<8x1xf32>
      %c1_20 = arith.constant 1 : index
      %c0_21 = arith.constant 0 : index
      %c0_22 = arith.constant 0 : index
      %42 = vector.load %arg13[%c1_20, %c0_21, %c0_22] : memref<2x8x16xf32, #tpu.memory_space<vmem>>, vector<1x8x16xf32>
      %43 = vector.shape_cast %42 : vector<1x8x16xf32> to vector<8x16xf32>
      %44 = vector.broadcast %41 : vector<8x1xf32> to vector<8x16xf32>
      %45 = arith.mulf %43, %44 : vector<8x16xf32>
      %c0_23 = arith.constant 0 : index
      %c0_24 = arith.constant 0 : index
      %c1_25 = arith.constant 1 : index
      %c0_26 = arith.constant 0 : index
      %46 = vector.load %arg9[%c0_23, %c0_24, %c1_25, %c0_26] : memref<8x1x2x16xf32, #tpu.memory_space<vmem>>, vector<8x1x1x16xf32>
      %47 = vector.shape_cast %46 : vector<8x1x1x16xf32> to vector<8x16xf32>
      %48 = vector.shape_cast %45 : vector<8x16xf32> to vector<8x1x1x16xf32>
      tpu.vector_store %arg9[%c0_23, %c0_24, %c1_25, %c0_26], %48 {strides = array<i32>} : memref<8x1x2x16xf32, #tpu.memory_space<vmem>>, vector<8x1x1x16xf32>,
    } else {
    }
    return
  }
  func.func @transform_0(%arg0: i32, %arg1: i32, %arg2: i32, %arg3: memref<2xi32, #tpu.memory_space<smem>>, %arg4: memref<2xi32, #tpu.memory_space<smem>>) -> (i32, i32, i32, i32) {
    %c0_i32 = arith.constant 0 : i32
    %c0_i32_0 = arith.constant 0 : i32
    %c0_i32_1 = arith.constant 0 : i32
    return %arg0, %arg1, %c0_i32, %c0_i32_0 : i32, i32, i32, i32
  }
  func.func @transform_1(%arg0: i32, %arg1: i32, %arg2: i32, %arg3: memref<2xi32, #tpu.memory_space<smem>>, %arg4: memref<2xi32, #tpu.memory_space<smem>>) -> (i32, i32, i32, i32) {
    %c1_i32 = arith.constant 1 : i32
    %0 = arith.muli %arg0, %c1_i32 : i32
    %1 = arith.addi %0, %arg1 : i32
    %c1_i32_0 = arith.constant 1 : i32
    %2 = arith.muli %1, %c1_i32_0 : i32
    %3 = arith.addi %2, %arg2 : i32
    %4 = arith.index_cast %3 : i32 to index
    %5 = memref.load %arg3[%4] : memref<2xi32, #tpu.memory_space<smem>>
    %c0_i32 = arith.constant 0 : i32
    %c0_i32_1 = arith.constant 0 : i32
    %c0_i32_2 = arith.constant 0 : i32
    return %arg0, %5, %c0_i32, %c0_i32_1 : i32, i32, i32, i32
  }
  func.func @transform_2(%arg0: i32, %arg1: i32, %arg2: i32, %arg3: memref<2xi32, #tpu.memory_space<smem>>, %arg4: memref<2xi32, #tpu.memory_space<smem>>) -> (i32, i32, i32, i32) {
    %c1_i32 = arith.constant 1 : i32
    %0 = arith.muli %arg0, %c1_i32 : i32
    %1 = arith.addi %0, %arg1 : i32
    %c1_i32_0 = arith.constant 1 : i32
    %2 = arith.muli %1, %c1_i32_0 : i32
    %3 = arith.addi %2, %arg2 : i32
    %4 = arith.index_cast %3 : i32 to index
    %5 = memref.load %arg3[%4] : memref<2xi32, #tpu.memory_space<smem>>
    %c0_i32 = arith.constant 0 : i32
    %c0_i32_1 = arith.constant 0 : i32
    %c0_i32_2 = arith.constant 0 : i32
    return %arg0, %5, %c0_i32, %c0_i32_1 : i32, i32, i32, i32
  }
  func.func @transform_3(%arg0: i32, %arg1: i32, %arg2: i32, %arg3: memref<2xi32, #tpu.memory_space<smem>>, %arg4: memref<2xi32, #tpu.memory_space<smem>>) -> (i32, i32, i32) {
    %c1_i32 = arith.constant 1 : i32
    %0 = arith.muli %arg0, %c1_i32 : i32
    %1 = arith.addi %0, %arg1 : i32
    %c1_i32_0 = arith.constant 1 : i32
    %2 = arith.muli %1, %c1_i32_0 : i32
    %3 = arith.addi %2, %arg2 : i32
    %4 = arith.index_cast %3 : i32 to index
    %5 = memref.load %arg3[%4] : memref<2xi32, #tpu.memory_space<smem>>
    %c0_i32 = arith.constant 0 : i32
    return %arg0, %arg1, %5 : i32, i32, i32
  }
  func.func @transform_4(%arg0: i32, %arg1: i32, %arg2: i32, %arg3: memref<2xi32, #tpu.memory_space<smem>>, %arg4: memref<2xi32, #tpu.memory_space<smem>>) -> (i32, i32, i32, i32) {
    %c0_i32 = arith.constant 0 : i32
    %c0_i32_0 = arith.constant 0 : i32
    %c0_i32_1 = arith.constant 0 : i32
    return %arg1, %arg0, %c0_i32, %c0_i32_0 : i32, i32, i32, i32
  }
}

</mosaic_0001>

<llo_original>
// kernel: tpu_custom_call.1
$region0: #{tpu_custom_call.1}
  #allocation0 [shape = 'u32[]', space=smem, size = 0x4, offset = 0x4, fixed_abs, tag = 'smem constant byte address 0x4 - core index']
  #allocation1 [shape = 'u32[144,128]{1,0:T(1,128)}', space=vmem, size = 0x12000, scoped, tag = 'internal scratch']
  #allocation2 [shape = 'f32[2,8,16]{2,1,0:T(8,128)}', space=vmem, size = 0x2000, scoped, tag = 'scratch operand']
  #allocation3 [shape = 'f32[2,8,1]{2,1,0:T(8,128)}', space=vmem, size = 0x2000, scoped, tag = 'scratch operand']
  #allocation4 [shape = 'f32[2,8,1]{2,1,0:T(8,128)}', space=vmem, size = 0x2000, scoped, tag = 'scratch operand']
  #allocation5 [shape = 'f32[2,8,16]{2,1,0:T(8,128)}', space=vmem, size = 0x2000, scoped, tag = 'scratch operand']
  #allocation6 [shape = 's32[1]{0}', space=sflag, size = 0x4, scoped, tag = 'scoped memory for tpu_custom_call.1']
  #allocation7 [shape = 'u8[512]{0}', space=smem, size = 0x200, scoped, tag = 'prefetched SMEM operand 0']
  #allocation8 [shape = 'u8[512]{0}', space=smem, size = 0x200, scoped, tag = 'prefetched SMEM operand 1']
  %s0 = inlined_call_operand.hbm [shape: s32[2], index: 0, kind: input, shape index: {}]
  %s1 = inlined_call_operand.vmem [shape: s32[2], index: 1, kind: input, shape index: {}]
  %s2 = inlined_call_operand.hbm [shape: f32[2,8,2,16], index: 2, kind: input, shape index: {}]
  %s3 = inlined_call_operand.hbm [shape: f32[2,8,2,16], index: 3, kind: input, shape index: {}]
  %s4 = inlined_call_operand.hbm [shape: f32[2,8,2,16], index: 4, kind: input, shape index: {}]
  %s5 = inlined_call_operand.vmem [shape: s8[2,8,8], index: 5, kind: input, shape index: {}]
  %s6 = inlined_call_operand.hbm [shape: f32[8,2,2,16], index: 6, kind: output, shape index: {}]
  %s7 = sld [smem:[#allocation0]]
  $region73: #{tpu_custom_call.1} parent=0
    _
  %s9 = ssub.s32 1, %s7
  %s10 = scalar_select 0, %s9, %s7
  %12 = dma.hbm_to_smem %s0, 16, [#allocation7], [#allocation6]
  %s13 = sshll.u32 %s1, 4
  %s14 = int_to_ptr.vmem [resolvable:$true] %s13
  %16 = dma.vmem_to_smem %s14, 16, [#allocation8], [#allocation6]
  %17 = dma.done [#allocation6], 32
  %18 = sfence
  $region1: #{tpu_custom_call.1} parent=0
    #allocation9 [shape = 'u8[16384]{0}', space=vmem, size = 0x4000, scoped, tag = 'input window, operand 2']
    #allocation10 [shape = 's32[2]{0}', space=sflag, size = 0x8, scoped, tag = 'scoped memory for tpu_custom_call.1']
    #allocation11 [shape = 's32[2]{0}', space=sflag, size = 0x8, scoped, tag = 'scoped memory for tpu_custom_call.1']
    #allocation12 [shape = 'u8[16384]{0}', space=vmem, size = 0x4000, scoped, tag = 'input window, operand 3']
    #allocation13 [shape = 's32[2]{0}', space=sflag, size = 0x8, scoped, tag = 'scoped memory for tpu_custom_call.1']
    #allocation14 [shape = 'u8[16384]{0}', space=vmem, size = 0x4000, scoped, tag = 'input window, operand 4']
    #allocation15 [shape = 'u8[16384]{0}', space=vmem, size = 0x4000, scoped, tag = 'output window, operand 0']
    %19 = vsyncpa [#allocation10], 0
    %s20 = scalar_lea.sflag [#allocation10], 1
    %21 = vsyncpa %s20, 0
    %22 = vsyncpa [#allocation13], 0
    %s23 = scalar_lea.sflag [#allocation13], 1
    %24 = vsyncpa %s23, 0
    %25 = vsyncpa [#allocation11], 0
    %s26 = scalar_lea.sflag [#allocation11], 1
    %27 = vsyncpa %s26, 0
    loop: start=0, step=1, limit=4
    $region2: #{tpu_custom_call.1} parent=1 // loop_pre_header
      _
    $region3: #{tpu_custom_call.1} parent=1 // loop_header
      %s29 = sphi 0, %s33
      %p30 = scmp.ge.s32.totalorder %s29, 4
      %s36 = sphi 0, %s55
      %s37 = sphi 0, %s51
      %s38 = sphi 0, %s47
      %s39 = sphi 0, %s36
      %s40 = sphi 0, %s37
      %s41 = sphi 0, %s38
      %s42 = sphi 0, %s39
      %s43 = sphi 0, %s40
      %s44 = sphi 0, %s41
      %s60 = sphi 0, %s62
      %s63 = sphi 0, %s60
      %s64 = sphi 0, %s63
      %s80 = sphi 0, %s64
      %s94 = sphi 0, %s96
      %s97 = sphi 0, %s94
      %s98 = sphi 0, %s97
      %s114 = sphi 0, %s98
      %s128 = sphi 0, %s130
      %s131 = sphi 0, %s128
      %s132 = sphi 0, %s131
      %s148 = sphi 0, %s132
      %s164 = sphi 0, %s166
      %s167 = sphi 0, %s164
      %s168 = sphi 0, %s167
      %s184 = sphi 0, %s168
      %s192 = sphi 0, %s194
      %s195 = sphi 0, %s192
      %s196 = sphi 0, %s195
      %s212 = sphi 0, %s196
    $region4: #{tpu_custom_call.1} parent=1 // loop_header_branch
      %32 = sbr.rel (%p30) target = $region8
    $region5: #{tpu_custom_call.1} parent=1 // loop_body
      %s34 = ssub.s32 %s29, 1
      %s35 = ssub.s32 %s29, 2
      %s45 = sadd.s32 1, %s38
      %p46 = scmp.ge.s32.totalorder %s45, 1
      %s47 = scalar_select %p46, 0, %s45
      %s48 = sadd.s32 1, %s37
      %s49 = scalar_select %p46, %s48, %s37
      %p50 = scmp.ge.s32.totalorder %s49, 1
      %s51 = scalar_select %p50, 0, %s49
      %s52 = sadd.s32 1, %s36
      %s53 = scalar_select %p50, %s52, %s36
      %p54 = scmp.ge.s32.totalorder %s53, 2
      %s55 = scalar_select %p54, 0, %s53
      %s56 = ssub.s32 %s36, %s55
      %s57 = ssub.s32 %s37, %s51
      %s58 = sor.u32 %s56, %s57
      %p59 = scmp.eq.s32.totalorder %s58, 0
      %s61 = sadd.s32 %s60, 1
      %s62 = scalar_select %p59, %s60, %s61
      %p65 = pneg %p59
      %p66 = scmp.eq.s32.totalorder %s29, 1
      %p67 = por %p65, %p66
      %p68 = scmp.ne.s32.totalorder %s60, %s63
      %p69 = scmp.eq.s32.totalorder %s29, 0
      %p70 = por %p68, %p69
      %p71 = scmp.ne.s32.totalorder %s60, %s63
      %p72 = scmp.eq.s32.totalorder %s34, 1
      %p73 = por %p71, %p72
      %p74 = scmp.ne.s32.totalorder %s63, %s64
      %p75 = scmp.eq.s32.totalorder %s34, 0
      %p76 = por %p74, %p75
      %p77 = scmp.ne.s32.totalorder %s63, %s64
      %p78 = scmp.eq.s32.totalorder %s35, 1
      %p79 = por %p77, %p78
      %p81 = scmp.ne.s32.totalorder %s64, %s80
      %p82 = scmp.eq.s32.totalorder %s35, 0
      %p83 = por %p81, %p82
      %s84 = sadd.s32 %s36, %s37
      %s85 = sadd.s32 %s84, %s38
      %s86 = sld [smem:[#allocation7 + %s85]]
      %s87 = sadd.s32 %s55, %s51
      %s88 = sadd.s32 %s87, %s47
      %s89 = sld [smem:[#allocation7 + %s88]]
      %s90 = ssub.s32 %s36, %s55
      %s91 = ssub.s32 %s86, %s89
      %s92 = sor.u32 %s90, %s91
      %p93 = scmp.eq.s32.totalorder %s92, 0
      %s95 = sadd.s32 %s94, 1
      %s96 = scalar_select %p93, %s94, %s95
      %p99 = pneg %p93
      %p100 = scmp.eq.s32.totalorder %s29, 1
      %p101 = por %p99, %p100
      %p102 = scmp.ne.s32.totalorder %s94, %s97
      %p103 = scmp.eq.s32.totalorder %s29, 0
      %p104 = por %p102, %p103
      %p105 = scmp.ne.s32.totalorder %s94, %s97
      %p106 = scmp.eq.s32.totalorder %s34, 1
      %p107 = por %p105, %p106
      %p108 = scmp.ne.s32.totalorder %s97, %s98
      %p109 = scmp.eq.s32.totalorder %s34, 0
      %p110 = por %p108, %p109
      %p111 = scmp.ne.s32.totalorder %s97, %s98
      %p112 = scmp.eq.s32.totalorder %s35, 1
      %p113 = por %p111, %p112
      %p115 = scmp.ne.s32.totalorder %s98, %s114
      %p116 = scmp.eq.s32.totalorder %s35, 0
      %p117 = por %p115, %p116
      %s118 = sadd.s32 %s36, %s37
      %s119 = sadd.s32 %s118, %s38
      %s120 = sld [smem:[#allocation7 + %s119]]
      %s121 = sadd.s32 %s55, %s51
      %s122 = sadd.s32 %s121, %s47
      %s123 = sld [smem:[#allocation7 + %s122]]
      %s124 = ssub.s32 %s36, %s55
      %s125 = ssub.s32 %s120, %s123
      %s126 = sor.u32 %s124, %s125
      %p127 = scmp.eq.s32.totalorder %s126, 0
      %s129 = sadd.s32 %s128, 1
      %s130 = scalar_select %p127, %s128, %s129
      %p133 = pneg %p127
      %p134 = scmp.eq.s32.totalorder %s29, 1
      %p135 = por %p133, %p134
      %p136 = scmp.ne.s32.totalorder %s128, %s131
      %p137 = scmp.eq.s32.totalorder %s29, 0
      %p138 = por %p136, %p137
      %p139 = scmp.ne.s32.totalorder %s128, %s131
      %p140 = scmp.eq.s32.totalorder %s34, 1
      %p141 = por %p139, %p140
      %p142 = scmp.ne.s32.totalorder %s131, %s132
      %p143 = scmp.eq.s32.totalorder %s34, 0
      %p144 = por %p142, %p143
      %p145 = scmp.ne.s32.totalorder %s131, %s132
      %p146 = scmp.eq.s32.totalorder %s35, 1
      %p147 = por %p145, %p146
      %p149 = scmp.ne.s32.totalorder %s132, %s148
      %p150 = scmp.eq.s32.totalorder %s35, 0
      %p151 = por %p149, %p150
      %s152 = sadd.s32 %s36, %s37
      %s153 = sadd.s32 %s152, %s38
      %s154 = sld [smem:[#allocation7 + %s153]]
      %s155 = sadd.s32 %s55, %s51
      %s156 = sadd.s32 %s155, %s47
      %s157 = sld [smem:[#allocation7 + %s156]]
      %s158 = ssub.s32 %s36, %s55
      %s159 = ssub.s32 %s37, %s51
      %s160 = sor.u32 %s158, %s159
      %s161 = ssub.s32 %s154, %s157
      %s162 = sor.u32 %s160, %s161
      %p163 = scmp.eq.s32.totalorder %s162, 0
      %s165 = sadd.s32 %s164, 1
      %s166 = scalar_select %p163, %s164, %s165
      %p169 = pneg %p163
      %p170 = scmp.eq.s32.totalorder %s29, 1
      %p171 = por %p169, %p170
      %p172 = scmp.ne.s32.totalorder %s164, %s167
      %p173 = scmp.eq.s32.totalorder %s29, 0
      %p174 = por %p172, %p173
      %p175 = scmp.ne.s32.totalorder %s164, %s167
      %p176 = scmp.eq.s32.totalorder %s34, 1
      %p177 = por %p175, %p176
      %p178 = scmp.ne.s32.totalorder %s167, %s168
      %p179 = scmp.eq.s32.totalorder %s34, 0
      %p180 = por %p178, %p179
      %p181 = scmp.ne.s32.totalorder %s167, %s168
      %p182 = scmp.eq.s32.totalorder %s35, 1
      %p183 = por %p181, %p182
      %p185 = scmp.ne.s32.totalorder %s168, %s184
      %p186 = scmp.eq.s32.totalorder %s35, 0
      %p187 = por %p185, %p186
      %s188 = ssub.s32 %s37, %s51
      %s189 = ssub.s32 %s36, %s55
      %s190 = sor.u32 %s188, %s189
      %p191 = scmp.eq.s32.totalorder %s190, 0
      %s193 = sadd.s32 %s192, 1
      %s194 = scalar_select %p191, %s192, %s193
      %p197 = pneg %p191
      %p198 = scmp.eq.s32.totalorder %s29, 1
      %p199 = por %p197, %p198
      %p200 = scmp.ne.s32.totalorder %s192, %s195
      %p201 = scmp.eq.s32.totalorder %s29, 0
      %p202 = por %p200, %p201
      %p203 = scmp.ne.s32.totalorder %s192, %s195
      %p204 = scmp.eq.s32.totalorder %s34, 1
      %p205 = por %p203, %p204
      %p206 = scmp.ne.s32.totalorder %s195, %s196
      %p207 = scmp.eq.s32.totalorder %s34, 0
      %p208 = por %p206, %p207
      %p209 = scmp.ne.s32.totalorder %s195, %s196
      %p210 = scmp.eq.s32.totalorder %s35, 1
      %p211 = por %p209, %p210
      %p213 = scmp.ne.s32.totalorder %s196, %s212
      %p214 = scmp.eq.s32.totalorder %s35, 0
      %p215 = por %p213, %p214
      %p216 = scmp.le.s32.totalorder 1, %s29
      %p217 = scmp.lt.s32.totalorder %s29, 3
      %p218 = pnand %p216, %p217
      %p219 = pneg %p218
      // Predicated region
      $region9: #{tpu_custom_call.1} parent=5 // pred_check
        _
      $region10: #{tpu_custom_call.1} parent=5 // pred_check_branch
        %221 = sbr.rel (%p218) target = $region12
      $region11: #{tpu_custom_call.1} parent=5 // pred_region
        %s222 = ssub.s32 %s29, 1
      $region12: #{tpu_custom_call.1} parent=5 // pred_fallthru
        _
      %p223 = scmp.lt.s32.totalorder %s29, 2
      // Predicated region
      $region13: #{tpu_custom_call.1} parent=5 // pred_check
        %p224 = pneg %p223
      $region14: #{tpu_custom_call.1} parent=5 // pred_check_branch
        %226 = sbr.rel (%p224) target = $region16
      $region15: #{tpu_custom_call.1} parent=5 // pred_region
        // Predicated region
        $region17: #{tpu_custom_call.1} parent=15 // pred_check
          %p227 = pneg %p70
        $region18: #{tpu_custom_call.1} parent=15 // pred_check_branch
          %229 = sbr.rel (%p227) target = $region20
        $region19: #{tpu_custom_call.1} parent=15 // pred_region
          %s230 = sand.u32 %s60, 1
          %s231 = scalar_lea.sflag [#allocation10], %s230
          %s232 = sand.u32 %s60, 1
          %s233 = smul.addr %s232, 16
          %s234 = scalar_lea.vmem [#allocation9], %s233
          %s235 = smul.u32 8, %s37
          %s237 = ssub.s32 256, 256
          %238 = vsyncadd %s231, %s237
          %s239 = smul.addr %s36, 8
          %s240 = sadd.s32 %s235, %s239
          %s241 = smul.addr %s240, 32
          %s242 = scalar_lea.hbm %s2, %s241
          %s243 = sshll.u32 %s234, 4
          %s244 = int_to_ptr.vmem [resolvable:$true] %s243
          %249 = dma.hbm_to_vmem [thread:$0]  %s242, 256, %s244, %s231, 32, 32, 2
        $region20: #{tpu_custom_call.1} parent=15 // pred_fallthru
          _
        // Predicated region
        $region21: #{tpu_custom_call.1} parent=15 // pred_check
          %p250 = pneg %p104
        $region22: #{tpu_custom_call.1} parent=15 // pred_check_branch
          %252 = sbr.rel (%p250) target = $region24
        $region23: #{tpu_custom_call.1} parent=15 // pred_region
          %s253 = sand.u32 %s29, 1
          %s254 = scalar_lea.sflag [#allocation13], %s253
          %s255 = sand.u32 %s94, 1
          %s256 = smul.addr %s255, 16
          %s257 = scalar_lea.vmem [#allocation12], %s256
          %s258 = sadd.s32 %s36, %s37
          %s259 = sadd.s32 %s258, %s38
          %s260 = sld [smem:[#allocation7 + %s259]]
          %s261 = smul.u32 8, %s260
          %s263 = ssub.s32 256, 256
          %264 = vsyncadd %s254, %s263
          %s265 = smul.addr %s36, 8
          %s266 = sadd.s32 %s261, %s265
          %s267 = smul.addr %s266, 32
          %s268 = scalar_lea.hbm %s3, %s267
          %s269 = sshll.u32 %s257, 4
          %s270 = int_to_ptr.vmem [resolvable:$true] %s269
          %275 = dma.hbm_to_vmem [thread:$0]  %s268, 256, %s270, %s254, 32, 32, 2
        $region24: #{tpu_custom_call.1} parent=15 // pred_fallthru
          _
        // Predicated region
        $region25: #{tpu_custom_call.1} parent=15 // pred_check
          %p276 = pneg %p138
        $region26: #{tpu_custom_call.1} parent=15 // pred_check_branch
          %278 = sbr.rel (%p276) target = $region28
        $region27: #{tpu_custom_call.1} parent=15 // pred_region
          %s279 = sand.u32 %s29, 1
          %s280 = scalar_lea.sflag [#allocation13], %s279
          %s281 = sand.u32 %s128, 1
          %s282 = smul.addr %s281, 16
          %s283 = scalar_lea.vmem [#allocation14], %s282
          %s284 = sadd.s32 %s36, %s37
          %s285 = sadd.s32 %s284, %s38
          %s286 = sld [smem:[#allocation7 + %s285]]
          %s287 = smul.u32 8, %s286
          %s289 = ssub.s32 256, 256
          %290 = vsyncadd %s280, %s289
          %s291 = smul.addr %s36, 8
          %s292 = sadd.s32 %s287, %s291
          %s293 = smul.addr %s292, 32
          %s294 = scalar_lea.hbm %s4, %s293
          %s295 = sshll.u32 %s283, 4
          %s296 = int_to_ptr.vmem [resolvable:$true] %s295
          %301 = dma.hbm_to_vmem [thread:$0]  %s294, 256, %s296, %s280, 32, 32, 2
        $region28: #{tpu_custom_call.1} parent=15 // pred_fallthru
          _
        // Predicated region
        $region29: #{tpu_custom_call.1} parent=15 // pred_check
          %p302 = pneg %p174
        $region30: #{tpu_custom_call.1} parent=15 // pred_check_branch
          %304 = sbr.rel (%p302) target = $region32
        $region31: #{tpu_custom_call.1} parent=15 // pred_region
          %s305 = sadd.s32 %s36, %s37
          %s306 = sadd.s32 %s305, %s38
          %s307 = sld [smem:[#allocation7 + %s306]]
          %p308 = scmp.lt.s32.totalorder %s36, 1
          %s309 = scalar_select %p308, %s36, 1
          %p310 = scmp.lt.s32.totalorder %s37, 0
          %s311 = scalar_select %p310, %s37, 0
          %p312 = scmp.lt.s32.totalorder %s307, 0
          %s313 = scalar_select %p312, %s307, 0
          %s314 = sadd.s32 %s313, %s311
          %s315 = sadd.s32 %s314, %s309
          %s316 = smul.addr %s315, 2
          %s317 = scalar_lea.vmem %s5, %s316
          %s318 = sadd.s32 %s36, %s37
          %s319 = sadd.s32 %s318, %s38
          %s320 = sld [smem:[#allocation7 + %s319]]
        $region32: #{tpu_custom_call.1} parent=15 // pred_fallthru
          _
      $region16: #{tpu_custom_call.1} parent=5 // pred_fallthru
        _
      %p321 = scmp.le.s32.totalorder 1, %s29
      %p322 = scmp.lt.s32.totalorder %s29, 3
      %p323 = pnand %p321, %p322
      %p324 = pneg %p323
      // Predicated region
      $region33: #{tpu_custom_call.1} parent=5 // pred_check
        _
      $region34: #{tpu_custom_call.1} parent=5 // pred_check_branch
        %326 = sbr.rel (%p323) target = $region36
      $region35: #{tpu_custom_call.1} parent=5 // pred_region
        %s327 = ssub.s32 %s29, 1
        %s328 = sand.u32 %s63, 1
        %s329 = scalar_lea.sflag [#allocation10], %s328
        %s330 = sand.u32 %s63, 1
        %s331 = smul.addr %s330, 16
        %s332 = scalar_lea.vmem [#allocation9], %s331
        // Predicated region
        $region37: #{tpu_custom_call.1} parent=35 // pred_check
          %p333 = pneg %p76
        $region38: #{tpu_custom_call.1} parent=35 // pred_check_branch
          %335 = sbr.rel (%p333) target = $region40
        $region39: #{tpu_custom_call.1} parent=35 // pred_region
          %336 = dma.done %s329, 256
        $region40: #{tpu_custom_call.1} parent=35 // pred_fallthru
          _
        %s337 = sand.u32 %s34, 1
        %s338 = scalar_lea.sflag [#allocation13], %s337
        %s339 = sand.u32 %s97, 1
        %s340 = smul.addr %s339, 16
        %s341 = scalar_lea.vmem [#allocation12], %s340
        // Predicated region
        $region41: #{tpu_custom_call.1} parent=35 // pred_check
          %p342 = pneg %p110
        $region42: #{tpu_custom_call.1} parent=35 // pred_check_branch
          %344 = sbr.rel (%p342) target = $region44
        $region43: #{tpu_custom_call.1} parent=35 // pred_region
          %345 = dma.done %s338, 256
        $region44: #{tpu_custom_call.1} parent=35 // pred_fallthru
          _
        %s346 = sand.u32 %s34, 1
        %s347 = scalar_lea.sflag [#allocation13], %s346
        %s348 = sand.u32 %s131, 1
        %s349 = smul.addr %s348, 16
        %s350 = scalar_lea.vmem [#allocation14], %s349
        // Predicated region
        $region45: #{tpu_custom_call.1} parent=35 // pred_check
          %p351 = pneg %p144
        $region46: #{tpu_custom_call.1} parent=35 // pred_check_branch
          %353 = sbr.rel (%p351) target = $region48
        $region47: #{tpu_custom_call.1} parent=35 // pred_region
          %354 = dma.done %s347, 256
        $region48: #{tpu_custom_call.1} parent=35 // pred_fallthru
          _
        %s355 = sand.u32 %s63, 1
        %s356 = scalar_lea.sflag [#allocation10], %s355
        %s357 = sand.u32 %s63, 1
        %s358 = smul.addr %s357, 16
        %s359 = scalar_lea.vmem [#allocation9], %s358
        %p360 = pneg %p76
        %p361 = pneg %p73
        %s362 = sand.u32 %s34, 1
        %s363 = scalar_lea.sflag [#allocation13], %s362
        %s364 = sand.u32 %s97, 1
        %s365 = smul.addr %s364, 16
        %s366 = scalar_lea.vmem [#allocation12], %s365
        %p367 = pneg %p110
        %p368 = pneg %p107
        %s369 = sand.u32 %s34, 1
        %s370 = scalar_lea.sflag [#allocation13], %s369
        %s371 = sand.u32 %s131, 1
        %s372 = smul.addr %s371, 16
        %s373 = scalar_lea.vmem [#allocation14], %s372
        %p374 = pneg %p144
        %p375 = pneg %p141
        %s376 = sadd.s32 %s39, %s40
        %s377 = sadd.s32 %s376, %s41
        %s378 = sld [smem:[#allocation7 + %s377]]
        %p379 = scmp.lt.s32.totalorder %s39, 1
        %s380 = scalar_select %p379, %s39, 1
        %p381 = scmp.lt.s32.totalorder %s40, 0
        %s382 = scalar_select %p381, %s40, 0
        %p383 = scmp.lt.s32.totalorder %s378, 0
        %s384 = scalar_select %p383, %s378, 0
        %s385 = sadd.s32 %s384, %s382
        %s386 = sadd.s32 %s385, %s380
        %s387 = smul.addr %s386, 2
        %s388 = scalar_lea.vmem %s5, %s387
        %p389 = pneg %p180
        %p390 = pneg %p177
        %p391 = pneg %p208
        %p392 = pneg %p205
        %s393 = sand.u32 %s195, 1
        %s394 = scalar_lea.sflag [#allocation11], %s393
        %s395 = sand.u32 %s195, 1
        %s396 = smul.addr %s395, 16
        %s397 = scalar_lea.vmem [#allocation15], %s396
        %s398 = smul.u32 8, %s40
        %s399 = sadd.s32 %s39, %s40
        %s400 = sadd.s32 %s399, %s41
        %s401 = sld [smem:[#allocation7 + %s400]]
        %s402 = smul.u32 8, %s401
        %s403 = sadd.s32 %s39, %s40
        %s404 = sadd.s32 %s403, %s41
        %s405 = sld [smem:[#allocation7 + %s404]]
        %s406 = smul.u32 8, %s405
        %s407 = sadd.s32 %s39, %s40
        %s408 = sadd.s32 %s407, %s41
        %s409 = sld [smem:[#allocation7 + %s408]]
        %p410 = scmp.lt.s32.totalorder %s39, 1
        %s411 = scalar_select %p410, %s39, 1
        %p412 = scmp.lt.s32.totalorder %s40, 0
        %s413 = scalar_select %p412, %s40, 0
        %p414 = scmp.lt.s32.totalorder %s409, 0
        %s415 = scalar_select %p414, %s409, 0
        %s416 = sadd.s32 %s415, %s413
        %s417 = sadd.s32 %s416, %s411
        %s418 = smul.addr %s417, 2
        %s419 = scalar_lea.vmem %s5, %s418
        %s420 = sadd.s32 %s39, %s40
        %s421 = sadd.s32 %s420, %s41
        %s422 = sld [smem:[#allocation7 + %s421]]
        %s423 = smul.u32 8, %s40
        %p426 = scmp.eq.s32.totalorder %s41, 0
        // Predicated region
        $region49: #{tpu_custom_call.1} parent=35 // pred_check
          %p427 = pneg %p426
        $region50: #{tpu_custom_call.1} parent=35 // pred_check_branch
          %429 = sbr.rel (%p427) target = $region52
        $region51: #{tpu_custom_call.1} parent=35 // pred_region
          %vm430 = vcmask 7168
          %431 = vst.msk [vmem:[#allocation3] sm:$0xff] %vm430, -1e+30
          %432 = vst.msk [vmem:[#allocation3 + $0x8] sm:$0xff] %vm430, -1e+30
          %433 = vst.msk [vmem:[#allocation4] sm:$0xff] %vm430, 0.0
          %434 = vst.msk [vmem:[#allocation4 + $0x8] sm:$0xff] %vm430, 0.0
          %vm435 = vcmask 130048
          %436 = vst.msk [vmem:[#allocation5] sm:$0xff] %vm435, 0.0
          %437 = vst.msk [vmem:[#allocation5 + $0x8] sm:$0xff] %vm435, 0.0
          %v438 = vld [vmem:[%s332] sm:$0x1]
          %v439 = vld [vmem:[%s332 + $0x2] sm:$0x1]
          %v440 = vld [vmem:[%s332 + $0x4] sm:$0x1]
          %v441 = vld [vmem:[%s332 + $0x6] sm:$0x1]
          %v442 = vld [vmem:[%s332 + $0x8] sm:$0x1]
          %v443 = vld [vmem:[%s332 + $0xa] sm:$0x1]
          %v444 = vld [vmem:[%s332 + $0xc] sm:$0x1]
          %v445 = vld [vmem:[%s332 + $0xe] sm:$0x1]
          %v446 = vmul.f32 %v438, 0.25
          %v447 = vmul.f32 %v439, 0.25
          %v448 = vmul.f32 %v440, 0.25
          %v449 = vmul.f32 %v441, 0.25
          %v450 = vmul.f32 %v442, 0.25
          %v451 = vmul.f32 %v443, 0.25
          %v452 = vmul.f32 %v444, 0.25
          %v453 = vmul.f32 %v445, 0.25
          %v462 = vrot.slane %v447, 7
          %vm463 = vcmask 1041409
          %v464 = vsel %vm463, %v462, %v446
          %v465 = vrot.slane %v448, 6
          %vm466 = vcmask 1042434
          %v467 = vsel %vm466, %v465, %v464
          %v468 = vrot.slane %v449, 5
          %vm469 = vcmask 1043459
          %v470 = vsel %vm469, %v468, %v467
          %v471 = vrot.slane %v450, 4
          %vm472 = vcmask 1044484
          %v473 = vsel %vm472, %v471, %v470
          %v474 = vrot.slane %v451, 3
          %vm475 = vcmask 1045509
          %v476 = vsel %vm475, %v474, %v473
          %v477 = vrot.slane %v452, 2
          %vm478 = vcmask 1046534
          %v479 = vsel %vm478, %v477, %v476
          %v480 = vrot.slane %v453, 1
          %vm481 = vcmask 1047559
          %v482 = vsel %vm481, %v480, %v479
          %484 = vst.msk [vmem:[#allocation2] sm:$0xff] %vm435, %v482
          %v485 = vld [vmem:[%s332 + $0x1] sm:$0x1]
          %v486 = vld [vmem:[%s332 + $0x3] sm:$0x1]
          %v487 = vld [vmem:[%s332 + $0x5] sm:$0x1]
          %v488 = vld [vmem:[%s332 + $0x7] sm:$0x1]
          %v489 = vld [vmem:[%s332 + $0x9] sm:$0x1]
          %v490 = vld [vmem:[%s332 + $0xb] sm:$0x1]
          %v491 = vld [vmem:[%s332 + $0xd] sm:$0x1]
          %v492 = vld [vmem:[%s332 + $0xf] sm:$0x1]
          %v493 = vmul.f32 %v485, 0.25
          %v494 = vmul.f32 %v486, 0.25
          %v495 = vmul.f32 %v487, 0.25
          %v496 = vmul.f32 %v488, 0.25
          %v497 = vmul.f32 %v489, 0.25
          %v498 = vmul.f32 %v490, 0.25
          %v499 = vmul.f32 %v491, 0.25
          %v500 = vmul.f32 %v492, 0.25
          %v509 = vrot.slane %v494, 7
          %v510 = vsel %vm463, %v509, %v493
          %v511 = vrot.slane %v495, 6
          %v512 = vsel %vm466, %v511, %v510
          %v513 = vrot.slane %v496, 5
          %v514 = vsel %vm469, %v513, %v512
          %v515 = vrot.slane %v497, 4
          %v516 = vsel %vm472, %v515, %v514
          %v517 = vrot.slane %v498, 3
          %v518 = vsel %vm475, %v517, %v516
          %v519 = vrot.slane %v499, 2
          %v520 = vsel %vm478, %v519, %v518
          %v521 = vrot.slane %v500, 1
          %v522 = vsel %vm481, %v521, %v520
          %s524 = scalar_lea.vmem [#allocation2], 8
          %525 = vst.msk [vmem:[%s524] sm:$0xff] %vm435, %v522
        $region52: #{tpu_custom_call.1} parent=35 // pred_fallthru
          _
        %s526 = sadd.s32 %s39, %s40
        %s527 = sld [smem:[#allocation8 + %s526]]
        %p528 = scmp.lt.s32.totalorder %s41, %s527
        // Predicated region
        $region53: #{tpu_custom_call.1} parent=35 // pred_check
          %p529 = pneg %p528
        $region54: #{tpu_custom_call.1} parent=35 // pred_check_branch
          %531 = sbr.rel (%p529) target = $region56
        $region55: #{tpu_custom_call.1} parent=35 // pred_region
          %v532 = vld [vmem:[%s419] sm:$0x3]
          %vm533 = vnez %v532
          %v534 = vsel %vm533, 16843009, 0
          %v535 = vunpack.c.0.s8 %v534
          %vm536 = vcmp.ne.s32.totalorder %v535, 0
          %v537 = vsel %vm536, 1, 0
          %v538 = vcvt.s32.f32 %v537
          %v539 = vsub.f32 %v538, 1.0
          %v540 = vmul.f32 %v539, 1e+30
          %v541 = vld [vmem:[#allocation2] sm:$0xff]
          %v542 = vld [vmem:[%s341] sm:$0x1]
          %v543 = vld [vmem:[%s341 + $0x2] sm:$0x1]
          %v544 = vld [vmem:[%s341 + $0x4] sm:$0x1]
          %v545 = vld [vmem:[%s341 + $0x6] sm:$0x1]
          %v546 = vld [vmem:[%s341 + $0x8] sm:$0x1]
          %v547 = vld [vmem:[%s341 + $0xa] sm:$0x1]
          %v548 = vld [vmem:[%s341 + $0xc] sm:$0x1]
          %v549 = vld [vmem:[%s341 + $0xe] sm:$0x1]
          %v550 = vld [vmem:[%s350] sm:$0x1]
          %v551 = vld [vmem:[%s350 + $0x2] sm:$0x1]
          %v552 = vld [vmem:[%s350 + $0x4] sm:$0x1]
          %v553 = vld [vmem:[%s350 + $0x6] sm:$0x1]
          %v554 = vld [vmem:[%s350 + $0x8] sm:$0x1]
          %v555 = vld [vmem:[%s350 + $0xa] sm:$0x1]
          %v556 = vld [vmem:[%s350 + $0xc] sm:$0x1]
          %v557 = vld [vmem:[%s350 + $0xe] sm:$0x1]
          %v566 = vrot.slane %v543, 7
          %vm567 = vcmask 1041409
          %v568 = vsel %vm567, %v566, %v542
          %v569 = vrot.slane %v544, 6
          %vm570 = vcmask 1042434
          %v571 = vsel %vm570, %v569, %v568
          %v572 = vrot.slane %v545, 5
          %vm573 = vcmask 1043459
          %v574 = vsel %vm573, %v572, %v571
          %v575 = vrot.slane %v546, 4
          %vm576 = vcmask 1044484
          %v577 = vsel %vm576, %v575, %v574
          %v578 = vrot.slane %v547, 3
          %vm579 = vcmask 1045509
          %v580 = vsel %vm579, %v578, %v577
          %v581 = vrot.slane %v548, 2
          %vm582 = vcmask 1046534
          %v583 = vsel %vm582, %v581, %v580
          %v584 = vrot.slane %v549, 1
          %vm585 = vcmask 1047559
          %v586 = vsel %vm585, %v584, %v583
          %vm587 = vcmask 130048
          %v589 = vsel %vm587, %v541, 0
          %v591 = vsel %vm587, %v586, 0
          %593 = vmatprep.subr.mxu0 0.0
          %594 = vmatpush1.xpose.msra.mxu0 0.0
          %595 = vmatprep.subr.mxu0 0.0
          %596 = vmatpush1.xpose.msra.mxu0 0.0
          %597 = vmatprep.subr.mxu0 0.0
          %598 = vmatpush1.xpose.msra.mxu0 0.0
          %599 = vmatprep.subr.mxu0 0.0
          %600 = vmatpush1.xpose.msra.mxu0 0.0
          %601 = vmatprep.subr.mxu0 0.0
          %602 = vmatpush1.xpose.msra.mxu0 0.0
          %603 = vmatprep.subr.mxu0 0.0
          %604 = vmatpush1.xpose.msra.mxu0 0.0
          %605 = vmatprep.subr.mxu0 0.0
          %606 = vmatpush1.xpose.msra.mxu0 0.0
          %607 = vmatprep.subr.mxu0 0.0
          %608 = vmatpush1.xpose.msra.mxu0 0.0
          %609 = vmatprep.subr.mxu0 0.0
          %610 = vmatpush1.xpose.msra.mxu0 0.0
          %611 = vmatprep.subr.mxu0 0.0
          %612 = vmatpush1.xpose.msra.mxu0 0.0
          %613 = vmatprep.subr.mxu0 0.0
          %614 = vmatpush1.xpose.msra.mxu0 0.0
          %615 = vmatprep.subr.mxu0 0.0
          %616 = vmatpush1.xpose.msra.mxu0 0.0
          %617 = vmatprep.subr.mxu0 0.0
          %618 = vmatpush1.xpose.msra.mxu0 0.0
          %619 = vmatprep.subr.mxu0 0.0
          %620 = vmatpush1.xpose.msra.mxu0 0.0
          %621 = vmatprep.subr.mxu0 0.0
          %622 = vmatpush1.xpose.msra.mxu0 0.0
          %623 = vmatprep.subr.mxu0 0.0
          %624 = vmatpush1.xpose.msra.mxu0 %v591
          %625 = vmatprep.subr.mxu0 0.0
          %626 = vmatpush2.xpose.msra.mxu0 0.0
          %627 = vmatprep.subr.mxu0 0.0
          %628 = vmatpush2.xpose.msra.mxu0 0.0
          %629 = vmatprep.subr.mxu0 0.0
          %630 = vmatpush2.xpose.msra.mxu0 0.0
          %631 = vmatprep.subr.mxu0 0.0
          %632 = vmatpush2.xpose.msra.mxu0 0.0
          %633 = vmatprep.subr.mxu0 0.0
          %634 = vmatpush2.xpose.msra.mxu0 0.0
          %635 = vmatprep.subr.mxu0 0.0
          %636 = vmatpush2.xpose.msra.mxu0 0.0
          %637 = vmatprep.subr.mxu0 0.0
          %638 = vmatpush2.xpose.msra.mxu0 0.0
          %639 = vmatprep.subr.mxu0 0.0
          %640 = vmatpush2.xpose.msra.mxu0 0.0
          %641 = vmatprep.subr.mxu0 0.0
          %642 = vmatpush2.xpose.msra.mxu0 0.0
          %643 = vmatprep.subr.mxu0 0.0
          %644 = vmatpush2.xpose.msra.mxu0 0.0
          %645 = vmatprep.subr.mxu0 0.0
          %646 = vmatpush2.xpose.msra.mxu0 0.0
          %647 = vmatprep.subr.mxu0 0.0
          %648 = vmatpush2.xpose.msra.mxu0 0.0
          %649 = vmatprep.subr.mxu0 0.0
          %650 = vmatpush2.xpose.msra.mxu0 0.0
          %651 = vmatprep.subr.mxu0 0.0
          %652 = vmatpush2.xpose.msra.mxu0 0.0
          %653 = vmatprep.subr.mxu0 0.0
          %654 = vmatpush2.xpose.msra.mxu0 0.0
          %655 = vmatprep.subr.mxu0 0.0
          %656 = vmatpush2.xpose.msra.mxu0 0.0
          %657 = vmatprep.mubr.f32.mxu0 0.0
          %658 = vmatmul.mubr.f32.gmra.mxu0 %v589
          %v659 = vpop.f32.mrf.mxu0
          %v660 = vadd.f32 %v540, %v659
          %v661 = vpop.f32.mrf.mxu0
          %662 = vdwg.mxu0
          %v663 = vld [vmem:[#allocation3] sm:$0xff]
          %vm664 = vcmask 64512
          %v665 = vsel %vm664, %v660, -inf
          %666 = vmax.xlane.f32.xlu0 %v665
          %v667 = vpop.xlane.xlu0 %666
          %v668 = vmax.f32 %v663, %v667
          %v669 = vsub.f32 %v663, %v668
          %v670 = vmul.f32 %v669, 1.442695
          %v671 = vpow.pop %v670
          %673 = vset.pattern.permute.xlu0 0
          %674 = vperm.xlu0 %673, %v668
          %v675 = vpop.permute.xlu0 %674
          %v677 = vsub.f32 %v660, %v675
          %v678 = vmul.f32 %v677, 1.442695
          %v679 = vpow.pop %v678
          %v680 = vmul.f32 %v679, %v538
          %v681 = vld [vmem:[#allocation4] sm:$0xff]
          %v682 = vmul.f32 %v671, %v681
          %v683 = vsel %vm664, %v680, 0.0
          %684 = vadd.xlane.f32.xlu0 %v683
          %v685 = vpop.xlane.xlu0 %684
          %v686 = vadd.f32 %v682, %v685
          %vm687 = vcmask 7168
          %688 = vst.msk [vmem:[#allocation4] sm:$0xff] %vm687, %v686
          %v689 = vld [vmem:[#allocation5] sm:$0xff]
          %691 = vset.pattern.permute.xlu0 0
          %692 = vperm.xlu0 %691, %v671
          %v693 = vpop.permute.xlu0 %692
          %v695 = vmul.f32 %v693, %v689
          %v704 = vrot.slane %v551, 7
          %v705 = vsel %vm567, %v704, %v550
          %v706 = vrot.slane %v552, 6
          %v707 = vsel %vm570, %v706, %v705
          %v708 = vrot.slane %v553, 5
          %v709 = vsel %vm573, %v708, %v707
          %v710 = vrot.slane %v554, 4
          %v711 = vsel %vm576, %v710, %v709
          %v712 = vrot.slane %v555, 3
          %v713 = vsel %vm579, %v712, %v711
          %v714 = vrot.slane %v556, 2
          %v715 = vsel %vm582, %v714, %v713
          %v716 = vrot.slane %v557, 1
          %v717 = vsel %vm585, %v716, %v715
          %v720 = vsel %vm664, %v680, 0
          %722 = vmatprep.subr.mxu0 0.0
          %723 = vmatpush1.msra.mxu0 0.0
          %724 = vmatprep.subr.mxu0 0.0
          %725 = vmatpush1.msra.mxu0 0.0
          %726 = vmatprep.subr.mxu0 0.0
          %727 = vmatpush1.msra.mxu0 0.0
          %728 = vmatprep.subr.mxu0 0.0
          %729 = vmatpush1.msra.mxu0 0.0
          %730 = vmatprep.subr.mxu0 0.0
          %731 = vmatpush1.msra.mxu0 0.0
          %732 = vmatprep.subr.mxu0 0.0
          %733 = vmatpush1.msra.mxu0 0.0
          %734 = vmatprep.subr.mxu0 0.0
          %735 = vmatpush1.msra.mxu0 0.0
          %736 = vmatprep.subr.mxu0 0.0
          %737 = vmatpush1.msra.mxu0 0.0
          %738 = vmatprep.subr.mxu0 0.0
          %739 = vmatpush1.msra.mxu0 0.0
          %740 = vmatprep.subr.mxu0 0.0
          %741 = vmatpush1.msra.mxu0 0.0
          %742 = vmatprep.subr.mxu0 0.0
          %743 = vmatpush1.msra.mxu0 0.0
          %744 = vmatprep.subr.mxu0 0.0
          %745 = vmatpush1.msra.mxu0 0.0
          %746 = vmatprep.subr.mxu0 0.0
          %747 = vmatpush1.msra.mxu0 0.0
          %748 = vmatprep.subr.mxu0 0.0
          %749 = vmatpush1.msra.mxu0 0.0
          %750 = vmatprep.subr.mxu0 0.0
          %751 = vmatpush1.msra.mxu0 0.0
          %752 = vmatprep.subr.mxu0 0.0
          %753 = vmatpush1.msra.mxu0 %v717
          %754 = vmatprep.subr.mxu0 0.0
          %755 = vmatpush2.msra.mxu0 0.0
          %756 = vmatprep.subr.mxu0 0.0
          %757 = vmatpush2.msra.mxu0 0.0
          %758 = vmatprep.subr.mxu0 0.0
          %759 = vmatpush2.msra.mxu0 0.0
          %760 = vmatprep.subr.mxu0 0.0
          %761 = vmatpush2.msra.mxu0 0.0
          %762 = vmatprep.subr.mxu0 0.0
          %763 = vmatpush2.msra.mxu0 0.0
          %764 = vmatprep.subr.mxu0 0.0
          %765 = vmatpush2.msra.mxu0 0.0
          %766 = vmatprep.subr.mxu0 0.0
          %767 = vmatpush2.msra.mxu0 0.0
          %768 = vmatprep.subr.mxu0 0.0
          %769 = vmatpush2.msra.mxu0 0.0
          %770 = vmatprep.subr.mxu0 0.0
          %771 = vmatpush2.msra.mxu0 0.0
          %772 = vmatprep.subr.mxu0 0.0
          %773 = vmatpush2.msra.mxu0 0.0
          %774 = vmatprep.subr.mxu0 0.0
          %775 = vmatpush2.msra.mxu0 0.0
          %776 = vmatprep.subr.mxu0 0.0
          %777 = vmatpush2.msra.mxu0 0.0
          %778 = vmatprep.subr.mxu0 0.0
          %779 = vmatpush2.msra.mxu0 0.0
          %780 = vmatprep.subr.mxu0 0.0
          %781 = vmatpush2.msra.mxu0 0.0
          %782 = vmatprep.subr.mxu0 0.0
          %783 = vmatpush2.msra.mxu0 0.0
          %784 = vmatprep.subr.mxu0 0.0
          %785 = vmatpush2.msra.mxu0 0.0
          %786 = vmatprep.mubr.f32.mxu0 0.0
          %787 = vmatmul.mubr.f32.gmra.mxu0 %v720
          %v788 = vpop.f32.mrf.mxu0
          %v789 = vadd.f32 0.0, %v788
          %v790 = vpop.f32.mrf.mxu0
          %791 = vdwg.mxu0
          %v792 = vadd.f32 %v695, %v789
          %793 = vst.msk [vmem:[#allocation5] sm:$0xff] %vm587, %v792
          %794 = vst.msk [vmem:[#allocation3] sm:$0xff] %vm687, %v668
          %s795 = scalar_lea.vmem [#allocation2], 8
          %v796 = vld [vmem:[%s795] sm:$0xff]
          %v797 = vld [vmem:[%s341 + $0x1] sm:$0x1]
          %v798 = vld [vmem:[%s341 + $0x3] sm:$0x1]
          %v799 = vld [vmem:[%s341 + $0x5] sm:$0x1]
          %v800 = vld [vmem:[%s341 + $0x7] sm:$0x1]
          %v801 = vld [vmem:[%s341 + $0x9] sm:$0x1]
          %v802 = vld [vmem:[%s341 + $0xb] sm:$0x1]
          %v803 = vld [vmem:[%s341 + $0xd] sm:$0x1]
          %v804 = vld [vmem:[%s341 + $0xf] sm:$0x1]
          %v805 = vld [vmem:[%s350 + $0x1] sm:$0x1]
          %v806 = vld [vmem:[%s350 + $0x3] sm:$0x1]
          %v807 = vld [vmem:[%s350 + $0x5] sm:$0x1]
          %v808 = vld [vmem:[%s350 + $0x7] sm:$0x1]
          %v809 = vld [vmem:[%s350 + $0x9] sm:$0x1]
          %v810 = vld [vmem:[%s350 + $0xb] sm:$0x1]
          %v811 = vld [vmem:[%s350 + $0xd] sm:$0x1]
          %v812 = vld [vmem:[%s350 + $0xf] sm:$0x1]
          %v821 = vrot.slane %v798, 7
          %v822 = vsel %vm567, %v821, %v797
          %v823 = vrot.slane %v799, 6
          %v824 = vsel %vm570, %v823, %v822
          %v825 = vrot.slane %v800, 5
          %v826 = vsel %vm573, %v825, %v824
          %v827 = vrot.slane %v801, 4
          %v828 = vsel %vm576, %v827, %v826
          %v829 = vrot.slane %v802, 3
          %v830 = vsel %vm579, %v829, %v828
          %v831 = vrot.slane %v803, 2
          %v832 = vsel %vm582, %v831, %v830
          %v833 = vrot.slane %v804, 1
          %v834 = vsel %vm585, %v833, %v832
          %v836 = vsel %vm587, %v796, 0
          %v838 = vsel %vm587, %v834, 0
          %840 = vmatprep.subr.mxu0 0.0
          %841 = vmatpush1.xpose.msra.mxu0 0.0
          %842 = vmatprep.subr.mxu0 0.0
          %843 = vmatpush1.xpose.msra.mxu0 0.0
          %844 = vmatprep.subr.mxu0 0.0
          %845 = vmatpush1.xpose.msra.mxu0 0.0
          %846 = vmatprep.subr.mxu0 0.0
          %847 = vmatpush1.xpose.msra.mxu0 0.0
          %848 = vmatprep.subr.mxu0 0.0
          %849 = vmatpush1.xpose.msra.mxu0 0.0
          %850 = vmatprep.subr.mxu0 0.0
          %851 = vmatpush1.xpose.msra.mxu0 0.0
          %852 = vmatprep.subr.mxu0 0.0
          %853 = vmatpush1.xpose.msra.mxu0 0.0
          %854 = vmatprep.subr.mxu0 0.0
          %855 = vmatpush1.xpose.msra.mxu0 0.0
          %856 = vmatprep.subr.mxu0 0.0
          %857 = vmatpush1.xpose.msra.mxu0 0.0
          %858 = vmatprep.subr.mxu0 0.0
          %859 = vmatpush1.xpose.msra.mxu0 0.0
          %860 = vmatprep.subr.mxu0 0.0
          %861 = vmatpush1.xpose.msra.mxu0 0.0
          %862 = vmatprep.subr.mxu0 0.0
          %863 = vmatpush1.xpose.msra.mxu0 0.0
          %864 = vmatprep.subr.mxu0 0.0
          %865 = vmatpush1.xpose.msra.mxu0 0.0
          %866 = vmatprep.subr.mxu0 0.0
          %867 = vmatpush1.xpose.msra.mxu0 0.0
          %868 = vmatprep.subr.mxu0 0.0
          %869 = vmatpush1.xpose.msra.mxu0 0.0
          %870 = vmatprep.subr.mxu0 0.0
          %871 = vmatpush1.xpose.msra.mxu0 %v838
          %872 = vmatprep.subr.mxu0 0.0
          %873 = vmatpush2.xpose.msra.mxu0 0.0
          %874 = vmatprep.subr.mxu0 0.0
          %875 = vmatpush2.xpose.msra.mxu0 0.0
          %876 = vmatprep.subr.mxu0 0.0
          %877 = vmatpush2.xpose.msra.mxu0 0.0
          %878 = vmatprep.subr.mxu0 0.0
          %879 = vmatpush2.xpose.msra.mxu0 0.0
          %880 = vmatprep.subr.mxu0 0.0
          %881 = vmatpush2.xpose.msra.mxu0 0.0
          %882 = vmatprep.subr.mxu0 0.0
          %883 = vmatpush2.xpose.msra.mxu0 0.0
          %884 = vmatprep.subr.mxu0 0.0
          %885 = vmatpush2.xpose.msra.mxu0 0.0
          %886 = vmatprep.subr.mxu0 0.0
          %887 = vmatpush2.xpose.msra.mxu0 0.0
          %888 = vmatprep.subr.mxu0 0.0
          %889 = vmatpush2.xpose.msra.mxu0 0.0
          %890 = vmatprep.subr.mxu0 0.0
          %891 = vmatpush2.xpose.msra.mxu0 0.0
          %892 = vmatprep.subr.mxu0 0.0
          %893 = vmatpush2.xpose.msra.mxu0 0.0
          %894 = vmatprep.subr.mxu0 0.0
          %895 = vmatpush2.xpose.msra.mxu0 0.0
          %896 = vmatprep.subr.mxu0 0.0
          %897 = vmatpush2.xpose.msra.mxu0 0.0
          %898 = vmatprep.subr.mxu0 0.0
          %899 = vmatpush2.xpose.msra.mxu0 0.0
          %900 = vmatprep.subr.mxu0 0.0
          %901 = vmatpush2.xpose.msra.mxu0 0.0
          %902 = vmatprep.subr.mxu0 0.0
          %903 = vmatpush2.xpose.msra.mxu0 0.0
          %904 = vmatprep.mubr.f32.mxu0 0.0
          %905 = vmatmul.mubr.f32.gmra.mxu0 %v836
          %v906 = vpop.f32.mrf.mxu0
          %v907 = vadd.f32 %v540, %v906
          %v908 = vpop.f32.mrf.mxu0
          %909 = vdwg.mxu0
          %s910 = scalar_lea.vmem [#allocation3], 8
          %v911 = vld [vmem:[%s910] sm:$0xff]
          %v912 = vsel %vm664, %v907, -inf
          %913 = vmax.xlane.f32.xlu0 %v912
          %v914 = vpop.xlane.xlu0 %913
          %v915 = vmax.f32 %v911, %v914
          %v916 = vsub.f32 %v911, %v915
          %v917 = vmul.f32 %v916, 1.442695
          %v918 = vpow.pop %v917
          %920 = vset.pattern.permute.xlu0 0
          %921 = vperm.xlu0 %920, %v915
          %v922 = vpop.permute.xlu0 %921
          %v924 = vsub.f32 %v907, %v922
          %v925 = vmul.f32 %v924, 1.442695
          %v926 = vpow.pop %v925
          %v927 = vmul.f32 %v926, %v538
          %s928 = scalar_lea.vmem [#allocation4], 8
          %v929 = vld [vmem:[%s928] sm:$0xff]
          %v930 = vmul.f32 %v918, %v929
          %v931 = vsel %vm664, %v927, 0.0
          %932 = vadd.xlane.f32.xlu0 %v931
          %v933 = vpop.xlane.xlu0 %932
          %v934 = vadd.f32 %v930, %v933
          %935 = vst.msk [vmem:[%s928] sm:$0xff] %vm687, %v934
          %s936 = scalar_lea.vmem [#allocation5], 8
          %v937 = vld [vmem:[%s936] sm:$0xff]
          %939 = vset.pattern.permute.xlu0 0
          %940 = vperm.xlu0 %939, %v918
          %v941 = vpop.permute.xlu0 %940
          %v943 = vmul.f32 %v941, %v937
          %v952 = vrot.slane %v806, 7
          %v953 = vsel %vm567, %v952, %v805
          %v954 = vrot.slane %v807, 6
          %v955 = vsel %vm570, %v954, %v953
          %v956 = vrot.slane %v808, 5
          %v957 = vsel %vm573, %v956, %v955
          %v958 = vrot.slane %v809, 4
          %v959 = vsel %vm576, %v958, %v957
          %v960 = vrot.slane %v810, 3
          %v961 = vsel %vm579, %v960, %v959
          %v962 = vrot.slane %v811, 2
          %v963 = vsel %vm582, %v962, %v961
          %v964 = vrot.slane %v812, 1
          %v965 = vsel %vm585, %v964, %v963
          %v968 = vsel %vm664, %v927, 0
          %970 = vmatprep.subr.mxu0 0.0
          %971 = vmatpush1.msra.mxu0 0.0
          %972 = vmatprep.subr.mxu0 0.0
          %973 = vmatpush1.msra.mxu0 0.0
          %974 = vmatprep.subr.mxu0 0.0
          %975 = vmatpush1.msra.mxu0 0.0
          %976 = vmatprep.subr.mxu0 0.0
          %977 = vmatpush1.msra.mxu0 0.0
          %978 = vmatprep.subr.mxu0 0.0
          %979 = vmatpush1.msra.mxu0 0.0
          %980 = vmatprep.subr.mxu0 0.0
          %981 = vmatpush1.msra.mxu0 0.0
          %982 = vmatprep.subr.mxu0 0.0
          %983 = vmatpush1.msra.mxu0 0.0
          %984 = vmatprep.subr.mxu0 0.0
          %985 = vmatpush1.msra.mxu0 0.0
          %986 = vmatprep.subr.mxu0 0.0
          %987 = vmatpush1.msra.mxu0 0.0
          %988 = vmatprep.subr.mxu0 0.0
          %989 = vmatpush1.msra.mxu0 0.0
          %990 = vmatprep.subr.mxu0 0.0
          %991 = vmatpush1.msra.mxu0 0.0
          %992 = vmatprep.subr.mxu0 0.0
          %993 = vmatpush1.msra.mxu0 0.0
          %994 = vmatprep.subr.mxu0 0.0
          %995 = vmatpush1.msra.mxu0 0.0
          %996 = vmatprep.subr.mxu0 0.0
          %997 = vmatpush1.msra.mxu0 0.0
          %998 = vmatprep.subr.mxu0 0.0
          %999 = vmatpush1.msra.mxu0 0.0
          %1000 = vmatprep.subr.mxu0 0.0
          %1001 = vmatpush1.msra.mxu0 %v965
          %1002 = vmatprep.subr.mxu0 0.0
          %1003 = vmatpush2.msra.mxu0 0.0
          %1004 = vmatprep.subr.mxu0 0.0
          %1005 = vmatpush2.msra.mxu0 0.0
          %1006 = vmatprep.subr.mxu0 0.0
          %1007 = vmatpush2.msra.mxu0 0.0
          %1008 = vmatprep.subr.mxu0 0.0
          %1009 = vmatpush2.msra.mxu0 0.0
          %1010 = vmatprep.subr.mxu0 0.0
          %1011 = vmatpush2.msra.mxu0 0.0
          %1012 = vmatprep.subr.mxu0 0.0
          %1013 = vmatpush2.msra.mxu0 0.0
          %1014 = vmatprep.subr.mxu0 0.0
          %1015 = vmatpush2.msra.mxu0 0.0
          %1016 = vmatprep.subr.mxu0 0.0
          %1017 = vmatpush2.msra.mxu0 0.0
          %1018 = vmatprep.subr.mxu0 0.0
          %1019 = vmatpush2.msra.mxu0 0.0
          %1020 = vmatprep.subr.mxu0 0.0
          %1021 = vmatpush2.msra.mxu0 0.0
          %1022 = vmatprep.subr.mxu0 0.0
          %1023 = vmatpush2.msra.mxu0 0.0
          %1024 = vmatprep.subr.mxu0 0.0
          %1025 = vmatpush2.msra.mxu0 0.0
          %1026 = vmatprep.subr.mxu0 0.0
          %1027 = vmatpush2.msra.mxu0 0.0
          %1028 = vmatprep.subr.mxu0 0.0
          %1029 = vmatpush2.msra.mxu0 0.0
          %1030 = vmatprep.subr.mxu0 0.0
          %1031 = vmatpush2.msra.mxu0 0.0
          %1032 = vmatprep.subr.mxu0 0.0
          %1033 = vmatpush2.msra.mxu0 0.0
          %1034 = vmatprep.mubr.f32.mxu0 0.0
          %1035 = vmatmul.mubr.f32.gmra.mxu0 %v968
          %v1036 = vpop.f32.mrf.mxu0
          %v1037 = vadd.f32 0.0, %v1036
          %v1038 = vpop.f32.mrf.mxu0
          %1039 = vdwg.mxu0
          %v1040 = vadd.f32 %v943, %v1037
          %1041 = vst.msk [vmem:[%s936] sm:$0xff] %vm587, %v1040
          %1042 = vst.msk [vmem:[%s910] sm:$0xff] %vm687, %v915
        $region56: #{tpu_custom_call.1} parent=35 // pred_fallthru
          _
        // Predicated region
        $region57: #{tpu_custom_call.1} parent=35 // pred_check
          %p1043 = pneg %p426
        $region58: #{tpu_custom_call.1} parent=35 // pred_check_branch
          %1045 = sbr.rel (%p1043) target = $region60
        $region59: #{tpu_custom_call.1} parent=35 // pred_region
          %v1046 = vld [vmem:[#allocation4] sm:$0xff]
          %v1047 = vrcp.pop %v1046
          %v1048 = vmul.f32 %v1046, %v1047
          %v1049 = vsub.f32 2.0, %v1048
          %v1050 = vmul.f32 %v1047, %v1049
          %vm1051 = vcmp.gt.f32.partialorder %v1046, 0.0
          %v1052 = vsel %vm1051, %v1050, 0.0
          %v1053 = vld [vmem:[#allocation5] sm:$0xff]
          %1055 = vset.pattern.permute.xlu0 0
          %1056 = vperm.xlu0 %1055, %v1052
          %v1057 = vpop.permute.xlu0 %1056
          %v1059 = vmul.f32 %v1053, %v1057
          %v1061 = vcombine.high %v1059, %v1059
          %v1063 = vunpack.c.l.s4 1966171168
          %v1064 = vunpack.c.0.s8 %v1063
          %v1065 = vlaneseq
          %v1066 = vshrl.u32 %v1065, 7
          %v1067 = vsub.s32 %v1064, %v1066
          %v1068 = vrot.slane %v1059, %v1067
          %v1070 = vunpack.c.l.s4 1966171168
          %v1071 = vunpack.c.0.s8 %v1070
          %v1072 = vlaneseq
          %v1073 = vshrl.u32 %v1072, 7
          %v1074 = vsub.s32 %v1071, %v1073
          %v1075 = vrot.slane %v1061, %v1074
          %v1076 = vcombine.high %v1068, %v1068
          %v1077 = vcombine.high %v1075, %v1075
          %v1079 = vunpack.c.l.s4 1966171168
          %v1080 = vunpack.c.0.s8 %v1079
          %v1081 = vlaneseq
          %v1082 = vshrl.u32 %v1081, 7
          %v1083 = vsub.s32 %v1080, %v1082
          %v1084 = vrot.slane %v1068, %v1083
          %v1086 = vunpack.c.l.s4 1966171168
          %v1087 = vunpack.c.0.s8 %v1086
          %v1088 = vlaneseq
          %v1089 = vshrl.u32 %v1088, 7
          %v1090 = vsub.s32 %v1087, %v1089
          %v1091 = vrot.slane %v1075, %v1090
          %v1093 = vunpack.c.l.s4 1966171168
          %v1094 = vunpack.c.0.s8 %v1093
          %v1095 = vlaneseq
          %v1096 = vshrl.u32 %v1095, 7
          %v1097 = vsub.s32 %v1094, %v1096
          %v1098 = vrot.slane %v1076, %v1097
          %v1100 = vunpack.c.l.s4 1966171168
          %v1101 = vunpack.c.0.s8 %v1100
          %v1102 = vlaneseq
          %v1103 = vshrl.u32 %v1102, 7
          %v1104 = vsub.s32 %v1101, %v1103
          %v1105 = vrot.slane %v1077, %v1104
          %v1106 = vcombine.high %v1084, %v1084
          %v1107 = vcombine.high %v1091, %v1091
          %v1108 = vcombine.high %v1098, %v1098
          %v1109 = vcombine.high %v1105, %v1105
          %vm1118 = vcmask 122880
          %1119 = vst.msk [vmem:[%s397] sm:$0x1] %vm1118, %v1084
          %1120 = vst.msk [vmem:[%s397 + $0x2] sm:$0x1] %vm1118, %v1098
          %1121 = vst.msk [vmem:[%s397 + $0x4] sm:$0x1] %vm1118, %v1106
          %1122 = vst.msk [vmem:[%s397 + $0x6] sm:$0x1] %vm1118, %v1108
          %1123 = vst.msk [vmem:[%s397 + $0x8] sm:$0x1] %vm1118, %v1091
          %1124 = vst.msk [vmem:[%s397 + $0xa] sm:$0x1] %vm1118, %v1105
          %1125 = vst.msk [vmem:[%s397 + $0xc] sm:$0x1] %vm1118, %v1107
          %1126 = vst.msk [vmem:[%s397 + $0xe] sm:$0x1] %vm1118, %v1109
          %s1127 = scalar_lea.vmem [#allocation4], 8
          %v1128 = vld [vmem:[%s1127] sm:$0xff]
          %v1129 = vrcp.pop %v1128
          %v1130 = vmul.f32 %v1128, %v1129
          %v1131 = vsub.f32 2.0, %v1130
          %v1132 = vmul.f32 %v1129, %v1131
          %vm1133 = vcmp.gt.f32.partialorder %v1128, 0.0
          %v1134 = vsel %vm1133, %v1132, 0.0
          %s1135 = scalar_lea.vmem [#allocation5], 8
          %v1136 = vld [vmem:[%s1135] sm:$0xff]
          %1138 = vset.pattern.permute.xlu0 0
          %1139 = vperm.xlu0 %1138, %v1134
          %v1140 = vpop.permute.xlu0 %1139
          %v1142 = vmul.f32 %v1136, %v1140
          %v1144 = vcombine.high %v1142, %v1142
          %v1146 = vunpack.c.l.s4 1966171168
          %v1147 = vunpack.c.0.s8 %v1146
          %v1148 = vlaneseq
          %v1149 = vshrl.u32 %v1148, 7
          %v1150 = vsub.s32 %v1147, %v1149
          %v1151 = vrot.slane %v1142, %v1150
          %v1153 = vunpack.c.l.s4 1966171168
          %v1154 = vunpack.c.0.s8 %v1153
          %v1155 = vlaneseq
          %v1156 = vshrl.u32 %v1155, 7
          %v1157 = vsub.s32 %v1154, %v1156
          %v1158 = vrot.slane %v1144, %v1157
          %v1159 = vcombine.high %v1151, %v1151
          %v1160 = vcombine.high %v1158, %v1158
          %v1162 = vunpack.c.l.s4 1966171168
          %v1163 = vunpack.c.0.s8 %v1162
          %v1164 = vlaneseq
          %v1165 = vshrl.u32 %v1164, 7
          %v1166 = vsub.s32 %v1163, %v1165
          %v1167 = vrot.slane %v1151, %v1166
          %v1169 = vunpack.c.l.s4 1966171168
          %v1170 = vunpack.c.0.s8 %v1169
          %v1171 = vlaneseq
          %v1172 = vshrl.u32 %v1171, 7
          %v1173 = vsub.s32 %v1170, %v1172
          %v1174 = vrot.slane %v1158, %v1173
          %v1176 = vunpack.c.l.s4 1966171168
          %v1177 = vunpack.c.0.s8 %v1176
          %v1178 = vlaneseq
          %v1179 = vshrl.u32 %v1178, 7
          %v1180 = vsub.s32 %v1177, %v1179
          %v1181 = vrot.slane %v1159, %v1180
          %v1183 = vunpack.c.l.s4 1966171168
          %v1184 = vunpack.c.0.s8 %v1183
          %v1185 = vlaneseq
          %v1186 = vshrl.u32 %v1185, 7
          %v1187 = vsub.s32 %v1184, %v1186
          %v1188 = vrot.slane %v1160, %v1187
          %v1189 = vcombine.high %v1167, %v1167
          %v1190 = vcombine.high %v1174, %v1174
          %v1191 = vcombine.high %v1181, %v1181
          %v1192 = vcombine.high %v1188, %v1188
          %1201 = vst.msk [vmem:[%s397 + $0x1] sm:$0x1] %vm1118, %v1167
          %1202 = vst.msk [vmem:[%s397 + $0x3] sm:$0x1] %vm1118, %v1181
          %1203 = vst.msk [vmem:[%s397 + $0x5] sm:$0x1] %vm1118, %v1189
          %1204 = vst.msk [vmem:[%s397 + $0x7] sm:$0x1] %vm1118, %v1191
          %1205 = vst.msk [vmem:[%s397 + $0x9] sm:$0x1] %vm1118, %v1174
          %1206 = vst.msk [vmem:[%s397 + $0xb] sm:$0x1] %vm1118, %v1188
          %1207 = vst.msk [vmem:[%s397 + $0xd] sm:$0x1] %vm1118, %v1190
          %1208 = vst.msk [vmem:[%s397 + $0xf] sm:$0x1] %vm1118, %v1192
        $region60: #{tpu_custom_call.1} parent=35 // pred_fallthru
          _
        %s1209 = sand.u32 %s195, 1
        %s1210 = scalar_lea.sflag [#allocation11], %s1209
        %s1211 = sand.u32 %s195, 1
        %s1212 = smul.addr %s1211, 16
        %s1213 = scalar_lea.vmem [#allocation15], %s1212
        // Predicated region
        $region61: #{tpu_custom_call.1} parent=35 // pred_check
          %p1214 = pneg %p205
        $region62: #{tpu_custom_call.1} parent=35 // pred_check_branch
          %1216 = sbr.rel (%p1214) target = $region64
        $region63: #{tpu_custom_call.1} parent=35 // pred_region
          %s1217 = smul.u32 8, %s40
          %s1219 = ssub.s32 256, 256
          %1220 = vsyncadd %s1210, %s1219
          %s1221 = smul.addr %s1217, 2
          %s1222 = sadd.s32 %s39, %s1221
          %s1223 = smul.addr %s1222, 32
          %s1224 = scalar_lea.hbm %s6, %s1223
          %s1225 = sshll.u32 %s1213, 4
          %s1226 = int_to_ptr.vmem [resolvable:$true] %s1225
          %1231 = dma.vmem_to_hbm [thread:$0]  %s1226, 256, %s1224, %s1210, 32, 64, 2
        $region64: #{tpu_custom_call.1} parent=35 // pred_fallthru
          _
      $region36: #{tpu_custom_call.1} parent=5 // pred_fallthru
        _
      %p1232 = scmp.le.s32.totalorder 2, %s29
      // Predicated region
      $region65: #{tpu_custom_call.1} parent=5 // pred_check
        %p1233 = pneg %p1232
      $region66: #{tpu_custom_call.1} parent=5 // pred_check_branch
        %1235 = sbr.rel (%p1233) target = $region68
      $region67: #{tpu_custom_call.1} parent=5 // pred_region
        %s1236 = ssub.s32 %s29, 2
        // Predicated region
        $region69: #{tpu_custom_call.1} parent=67 // pred_check
          %p1237 = pneg %p211
        $region70: #{tpu_custom_call.1} parent=67 // pred_check_branch
          %1239 = sbr.rel (%p1237) target = $region72
        $region71: #{tpu_custom_call.1} parent=67 // pred_region
          %s1240 = sand.u32 %s196, 1
          %s1241 = scalar_lea.sflag [#allocation11], %s1240
          %s1242 = sand.u32 %s196, 1
          %s1243 = smul.addr %s1242, 16
          %s1244 = scalar_lea.vmem [#allocation15], %s1243
          %1245 = dma.done %s1241, 256
        $region72: #{tpu_custom_call.1} parent=67 // pred_fallthru
          _
      $region68: #{tpu_custom_call.1} parent=5 // pred_fallthru
        _
    $region6: #{tpu_custom_call.1} parent=1 // loop_footer
      %s33 = sadd.s32 1, %s29
    $region7: #{tpu_custom_call.1} parent=1 // loop_footer_branch
      %28 = sbr.rel target = $region3
    $region8: #{tpu_custom_call.1} parent=1 // loop_exit
      _
    %1246 = vsyncpa [#allocation10], 1
    %s1247 = scalar_lea.sflag [#allocation10], 1
    %1248 = vsyncpa %s1247, 1
    %1249 = vsyncpa [#allocation13], 1
    %s1250 = scalar_lea.sflag [#allocation13], 1
    %1251 = vsyncpa %s1250, 1
    %1252 = vsyncpa [#allocation11], 1
    %s1253 = scalar_lea.sflag [#allocation11], 1
    %1254 = vsyncpa %s1253, 1

</llo_original>
